<compile_context>
chip_gen: v6e
topology: v6e:2x2x1
jax: 0.10.0
libtpu: 0.0.40
codegen_flags: <defaults>
</compile_context>

<pallas_src>
import jax
import jax.numpy as jnp
import numpy as np
from jax.experimental import pallas as pl
from jax.experimental.pallas import tpu as pltpu

EPS = 1e-8

# Squeezed leading-dim marker (falls back to the classic `None` spelling).
_SQ = pl.Squeezed() if hasattr(pl, "Squeezed") else None


# ---------------------------------------------------------------------------
# Kernel 1: per-row softmax cross-entropy; mean taken in the wrapper.
# ---------------------------------------------------------------------------
def _ce_kernel(pred_ref, tgt_ref, out_ref):
    logits = pred_ref[...].astype(jnp.float32) + 1e-08              # (TP, C)
    m = jnp.max(logits, axis=-1, keepdims=True)                     # (TP, 1)
    lse = m + jnp.log(jnp.sum(jnp.exp(logits - m), axis=-1, keepdims=True))
    cls = jax.lax.broadcasted_iota(jnp.int32, logits.shape, 1)      # (TP, C)
    onehot = (cls == tgt_ref[...]).astype(jnp.float32)              # (TP, C)
    picked = jnp.sum(logits * onehot, axis=-1, keepdims=True)       # (TP, 1)
    out_ref[...] = lse - picked                                     # (TP, 1)


def cross_entropy_rows(pred, target_2d, tp):
    P, C = pred.shape
    return pl.pallas_call(
        _ce_kernel,
        out_shape=jax.ShapeDtypeStruct((P, 1), jnp.float32),
        grid_spec=pltpu.PrefetchScalarGridSpec(
            num_scalar_prefetch=0,
            grid=(P // tp,),
            in_specs=[
                pl.BlockSpec((tp, C), lambda i: (i, 0)),
                pl.BlockSpec((tp, 1), lambda i: (i, 0)),
            ],
            out_specs=pl.BlockSpec((tp, 1), lambda i: (i, 0)),
        ),
        compiler_params=pltpu.CompilerParams(
            dimension_semantics=("parallel",)),
    )(pred, target_2d)


# ---------------------------------------------------------------------------
# Kernel 2: per (batch, row-tile) affinity matmul + BCE + loss_g row terms.
# Emits per-row partial sums; both grid axes are parallel (no resident
# accumulator), final reductions happen in the wrapper.
# ---------------------------------------------------------------------------
def _ctx_kernel(ctx_ref, gt_rows_ref, gt_full_ref, bce_ref, g_ref):
    x = ctx_ref[...].astype(jnp.float32)                            # (TN, N)

    # Affinity rows A[r*TN:(r+1)*TN, :] = G_rows @ G^T, contracted over K on the
    # MXU via dot_general (no explicit transpose).  bf16 operands are exact for
    # the 0/1 one-hot context_gt assumed by the module; accumulate in f32.
    # (For strictly one-hot gt a VPU integer-label compare could skip the MXU
    #  entirely; kept as a bmm to preserve the module's general semantics.)
    g_rows = gt_rows_ref[...].astype(jnp.bfloat16)                  # (TN, K)
    g_full = gt_full_ref[...].astype(jnp.bfloat16)                  # (N,  K)
    A = jax.lax.dot_general(
        g_rows, g_full,
        dimension_numbers=(((1,), (1,)), ((), ())),
        preferred_element_type=jnp.float32)                         # (TN, N)

    # Hoisted reused terms.
    xA = x * A
    one_minus_A = 1.0 - A

    # binary_cross_entropy_with_logits (stable), per-row (lane-axis) partial sums.
    bce = jnp.maximum(x, 0.0) - xA + jnp.log1p(jnp.exp(-jnp.abs(x)))
    bce_ref[...] = jnp.sum(bce, axis=1, keepdims=True)              # (TN, 1)

    # Row-wise sums for the log-ratio terms (lane-axis reductions only).
    s_xa = jnp.sum(xA, axis=1, keepdims=True)
    s_x = jnp.sum(x, axis=1, keepdims=True)
    s_a = jnp.sum(A, axis=1, keepdims=True)
    s_nxna = jnp.sum((1.0 - x) * one_minus_A, axis=1, keepdims=True)
    s_na = jnp.sum(one_minus_A, axis=1, keepdims=True)

    g_ref[...] = (
        2.0 * jnp.log(s_xa + EPS)            # loss_g_p + loss_g_r numerators
        - jnp.log(s_x + EPS)                 # loss_g_p denominator
        - jnp.log(s_a + EPS)                 # loss_g_r denominator
        + jnp.log(s_nxna + EPS)              # loss_g_s numerator
        - jnp.log(s_na + EPS)                # loss_g_s denominator
    )                                                               # (TN, 1)


def context_loss_rows(context, context_gt, tn):
    B, N, _ = context.shape
    K = context_gt.shape[2]
    R = N // tn
    return pl.pallas_call(
        _ctx_kernel,
        out_shape=(
            jax.ShapeDtypeStruct((B, N, 1), jnp.float32),   # per-row BCE sums
            jax.ShapeDtypeStruct((B, N, 1), jnp.float32),   # per-row loss_g terms
        ),
        grid_spec=pltpu.PrefetchScalarGridSpec(
            num_scalar_prefetch=0,
            grid=(B, R),
            in_specs=[
                pl.BlockSpec((_SQ, tn, N), lambda b, r: (b, r, 0)),  # context rows
                pl.BlockSpec((_SQ, tn, K), lambda b, r: (b, r, 0)),  # gt rows
                pl.BlockSpec((_SQ, N, K), lambda b, r: (b, 0, 0)),   # full gt (per batch)
            ],
            out_specs=(
                pl.BlockSpec((_SQ, tn, 1), lambda b, r: (b, r, 0)),
                pl.BlockSpec((_SQ, tn, 1), lambda b, r: (b, r, 0)),
            ),
        ),
        compiler_params=pltpu.CompilerParams(
            dimension_semantics=("parallel", "parallel"),
            vmem_limit_bytes=48 * 1024 * 1024,   # above default scoped limit, below physical on all gens
        ),
    )(context, context_gt, context_gt)


# ---------------------------------------------------------------------------
# Wrapper reproducing get_loss.forward semantics.
# ---------------------------------------------------------------------------
@jax.jit
def get_loss(pred, target, trans_feat, context, context_gt):
    del trans_feat  # unused by the PyTorch forward as well
    P, _ = pred.shape
    B, N, _ = context.shape

    tp = 128 if P % 128 == 0 else P
    tn = 128 if N % 128 == 0 else N

    ce_rows = cross_entropy_rows(pred, target.reshape(P, 1).astype(jnp.int32), tp)
    bce_rows, g_rows = context_loss_rows(context, context_gt, tn)

    loss = jnp.sum(ce_rows) / P                 # F.cross_entropy (mean)
    loss_p = jnp.sum(bce_rows) / (B * N * N)    # BCE-with-logits (mean)
    loss_g = -(jnp.sum(g_rows) / (B * N))       # -mean(loss_g_p + loss_g_r + loss_g_s)
    return loss + loss_p + loss_g


# ---------------------------------------------------------------------------
# Pure-JAX reference (for correctness check).
# ---------------------------------------------------------------------------
def _ref_loss(pred, target, context, context_gt):
    A = jnp.einsum("bnk,bmk->bnm", context_gt, context_gt)
    logits = pred + 1e-08
    lse = jax.scipy.special.logsumexp(logits, axis=-1)
    picked = jnp.take_along_axis(logits, target[:, None], axis=-1)[:, 0]
    ce = jnp.mean(lse - picked)
    x = context
    bce = jnp.mean(jnp.maximum(x, 0.0) - x * A + jnp.log1p(jnp.exp(-jnp.abs(x))))
    gp = jnp.log(jnp.sum(x * A, 2) + EPS) - jnp.log(jnp.sum(x, 2) + EPS)
    gr = jnp.log(jnp.sum(x * A, 2) + EPS) - jnp.log(jnp.sum(A, 2) + EPS)
    gs = jnp.log(jnp.sum((1 - x) * (1 - A), 2) + EPS) - jnp.log(jnp.sum(1 - A, 2) + EPS)
    g = -jnp.mean(gp + gr + gs)
    return ce + bce + g


if __name__ == "__main__":
    key = jax.random.PRNGKey(0)
    kp, kt, kc, kg, ktf = jax.random.split(key, 5)

    B, N, K = 2, 256, 16       # batch, points-per-context, one-hot classes for affinity
    P, C = 256, 8              # rows and classes for the cross-entropy head

    pred = jax.random.normal(kp, (P, C), dtype=jnp.float32)
    target = jax.random.randint(kt, (P,), 0, C, dtype=jnp.int32)
    context = jax.random.uniform(kc, (B, N, N), dtype=jnp.float32)   # in (0, 1)
    gt_labels = jax.random.randint(kg, (B, N), 0, K, dtype=jnp.int32)
    context_gt = jax.nn.one_hot(gt_labels, K, dtype=jnp.float32)     # (B, N, K)
    trans_feat = jax.random.normal(ktf, (B, 3, 3), dtype=jnp.float32)  # unused

    total = get_loss(pred, target, trans_feat, context, context_gt)
    total = jax.block_until_ready(total)

    ref = jax.block_until_ready(_ref_loss(pred, target, context, context_gt))
    np.testing.assert_allclose(np.asarray(total), np.asarray(ref), rtol=2e-4, atol=2e-4)

    print("KERNEL_OK")
</pallas_src>

<mosaic_0001>
module attributes {stable_mosaic.version = 11 : i64} {
  func.func @_ctx_kernel(%arg0: i32, %arg1: i32, %arg2: memref<1x128x256xf32, #tpu.memory_space<vmem>>, %arg3: memref<1x128x16xf32, #tpu.memory_space<vmem>>, %arg4: memref<1x256x16xf32, #tpu.memory_space<vmem>>, %arg5: memref<1x128x1xf32, #tpu.memory_space<vmem>>, %arg6: memref<1x128x1xf32, #tpu.memory_space<vmem>>) attributes {dimension_semantics = [#tpu.dimension_semantics<parallel>, #tpu.dimension_semantics<parallel>], iteration_bounds = array<i64: 2, 2>, scalar_prefetch = 0 : i64, scratch_operands = 0 : i64, tpu.core_type = #tpu.core_type<tc>, window_params = [{transform_indices = @transform_0, window_bounds = array<i64: 1, 128, 256>}, {transform_indices = @transform_1, window_bounds = array<i64: 1, 128, 16>}, {transform_indices = @transform_2, window_bounds = array<i64: 1, 256, 16>}, {transform_indices = @transform_3, window_bounds = array<i64: 1, 128, 1>}, {transform_indices = @transform_4, window_bounds = array<i64: 1, 128, 1>}]} {
    %c0 = arith.constant 0 : index
    %c0_0 = arith.constant 0 : index
    %c0_1 = arith.constant 0 : index
    %0 = vector.load %arg2[%c0, %c0_0, %c0_1] : memref<1x128x256xf32, #tpu.memory_space<vmem>>, vector<1x128x256xf32>
    %1 = vector.shape_cast %0 : vector<1x128x256xf32> to vector<128x256xf32>
    %c0_2 = arith.constant 0 : index
    %c0_3 = arith.constant 0 : index
    %c0_4 = arith.constant 0 : index
    %2 = vector.load %arg3[%c0_2, %c0_3, %c0_4] : memref<1x128x16xf32, #tpu.memory_space<vmem>>, vector<1x128x16xf32>
    %3 = vector.shape_cast %2 : vector<1x128x16xf32> to vector<128x16xf32>
    %4 = arith.truncf %3 : vector<128x16xf32> to vector<128x16xbf16>
    %c0_5 = arith.constant 0 : index
    %c0_6 = arith.constant 0 : index
    %c0_7 = arith.constant 0 : index
    %5 = vector.load %arg4[%c0_5, %c0_6, %c0_7] : memref<1x256x16xf32, #tpu.memory_space<vmem>>, vector<1x256x16xf32>
    %6 = vector.shape_cast %5 : vector<1x256x16xf32> to vector<256x16xf32>
    %7 = arith.truncf %6 : vector<256x16xf32> to vector<256x16xbf16>
    %cst = arith.constant dense<0.000000e+00> : vector<128x256xf32>
    %8 = tpu.matmul %4, %7, %cst {dimension_numbers = #tpu.dot_dimension_numbers<[1], [1], [0], [0], [0, 0, 1, 0], [], []>} : vector<128x16xbf16>, vector<256x16xbf16>, vector<128x256xf32> -> vector<128x256xf32>
    %9 = arith.mulf %1, %8 : vector<128x256xf32>
    %cst_8 = arith.constant 1.000000e+00 : f32
    %10 = vector.broadcast %cst_8 : f32 to vector<128x256xf32>
    %11 = arith.subf %10, %8 : vector<128x256xf32>
    %cst_9 = arith.constant 0.000000e+00 : f32
    %12 = vector.broadcast %cst_9 : f32 to vector<128x256xf32>
    %13 = arith.maximumf %1, %12 : vector<128x256xf32>
    %14 = arith.subf %13, %9 : vector<128x256xf32>
    %15 = math.absf %1 : vector<128x256xf32>
    %cst_10 = arith.constant 0.000000e+00 : f32
    %16 = vector.broadcast %cst_10 : f32 to vector<128x256xf32>
    %17 = arith.subf %16, %15 : vector<128x256xf32>
    %18 = math.exp %17 : vector<128x256xf32>
    %19 = math.log1p %18 : vector<128x256xf32>
    %20 = arith.addf %14, %19 : vector<128x256xf32>
    %cst_11 = arith.constant dense<0.000000e+00> : vector<128xf32>
    %21 = vector.multi_reduction <add>, %20, %cst_11 [1] : vector<128x256xf32> to vector<128xf32>
    %22 = vector.shape_cast %21 : vector<128xf32> to vector<128x1xf32>
    %c0_12 = arith.constant 0 : index
    %c0_13 = arith.constant 0 : index
    %c0_14 = arith.constant 0 : index
    %23 = vector.load %arg5[%c0_12, %c0_13, %c0_14] : memref<1x128x1xf32, #tpu.memory_space<vmem>>, vector<1x128x1xf32>
    %24 = vector.shape_cast %23 : vector<1x128x1xf32> to vector<128x1xf32>
    %25 = vector.shape_cast %22 : vector<128x1xf32> to vector<1x128x1xf32>
    tpu.vector_store %arg5[%c0_12, %c0_13, %c0_14], %25 {strides = array<i32>} : memref<1x128x1xf32, #tpu.memory_space<vmem>>, vector<1x128x1xf32>,
    %cst_15 = arith.constant dense<0.000000e+00> : vector<128xf32>
    %26 = vector.multi_reduction <add>, %9, %cst_15 [1] : vector<128x256xf32> to vector<128xf32>
    %27 = vector.shape_cast %26 : vector<128xf32> to vector<128x1xf32>
    %cst_16 = arith.constant dense<0.000000e+00> : vector<128xf32>
    %28 = vector.multi_reduction <add>, %1, %cst_16 [1] : vector<128x256xf32> to vector<128xf32>
    %29 = vector.shape_cast %28 : vector<128xf32> to vector<128x1xf32>
    %cst_17 = arith.constant dense<0.000000e+00> : vector<128xf32>
    %30 = vector.multi_reduction <add>, %8, %cst_17 [1] : vector<128x256xf32> to vector<128xf32>
    %31 = vector.shape_cast %30 : vector<128xf32> to vector<128x1xf32>
    %cst_18 = arith.constant 1.000000e+00 : f32
    %32 = vector.broadcast %cst_18 : f32 to vector<128x256xf32>
    %33 = arith.subf %32, %1 : vector<128x256xf32>
    %34 = arith.mulf %33, %11 : vector<128x256xf32>
    %cst_19 = arith.constant dense<0.000000e+00> : vector<128xf32>
    %35 = vector.multi_reduction <add>, %34, %cst_19 [1] : vector<128x256xf32> to vector<128xf32>
    %36 = vector.shape_cast %35 : vector<128xf32> to vector<128x1xf32>
    %cst_20 = arith.constant dense<0.000000e+00> : vector<128xf32>
    %37 = vector.multi_reduction <add>, %11, %cst_20 [1] : vector<128x256xf32> to vector<128xf32>
    %38 = vector.shape_cast %37 : vector<128xf32> to vector<128x1xf32>
    %cst_21 = arith.constant 9.99999993E-9 : f32
    %39 = vector.broadcast %cst_21 : f32 to vector<128x1xf32>
    %40 = arith.addf %27, %39 : vector<128x1xf32>
    %41 = math.log %40 : vector<128x1xf32>
    %cst_22 = arith.constant 2.000000e+00 : f32
    %42 = vector.broadcast %cst_22 : f32 to vector<128x1xf32>
    %43 = arith.mulf %42, %41 : vector<128x1xf32>
    %cst_23 = arith.constant 9.99999993E-9 : f32
    %44 = vector.broadcast %cst_23 : f32 to vector<128x1xf32>
    %45 = arith.addf %29, %44 : vector<128x1xf32>
    %46 = math.log %45 : vector<128x1xf32>
    %47 = arith.subf %43, %46 : vector<128x1xf32>
    %cst_24 = arith.constant 9.99999993E-9 : f32
    %48 = vector.broadcast %cst_24 : f32 to vector<128x1xf32>
    %49 = arith.addf %31, %48 : vector<128x1xf32>
    %50 = math.log %49 : vector<128x1xf32>
    %51 = arith.subf %47, %50 : vector<128x1xf32>
    %cst_25 = arith.constant 9.99999993E-9 : f32
    %52 = vector.broadcast %cst_25 : f32 to vector<128x1xf32>
    %53 = arith.addf %36, %52 : vector<128x1xf32>
    %54 = math.log %53 : vector<128x1xf32>
    %55 = arith.addf %51, %54 : vector<128x1xf32>
    %cst_26 = arith.constant 9.99999993E-9 : f32
    %56 = vector.broadcast %cst_26 : f32 to vector<128x1xf32>
    %57 = arith.addf %38, %56 : vector<128x1xf32>
    %58 = math.log %57 : vector<128x1xf32>
    %59 = arith.subf %55, %58 : vector<128x1xf32>
    %c0_27 = arith.constant 0 : index
    %c0_28 = arith.constant 0 : index
    %c0_29 = arith.constant 0 : index
    %60 = vector.load %arg6[%c0_27, %c0_28, %c0_29] : memref<1x128x1xf32, #tpu.memory_space<vmem>>, vector<1x128x1xf32>
    %61 = vector.shape_cast %60 : vector<1x128x1xf32> to vector<128x1xf32>
    %62 = vector.shape_cast %59 : vector<128x1xf32> to vector<1x128x1xf32>
    tpu.vector_store %arg6[%c0_27, %c0_28, %c0_29], %62 {strides = array<i32>} : memref<1x128x1xf32, #tpu.memory_space<vmem>>, vector<1x128x1xf32>,
    return
  }
  func.func @transform_0(%arg0: i32, %arg1: i32) -> (i32, i32, i32) {
    %c0_i32 = arith.constant 0 : i32
    %c0_i32_0 = arith.constant 0 : i32
    return %arg0, %arg1, %c0_i32 : i32, i32, i32
  }
  func.func @transform_1(%arg0: i32, %arg1: i32) -> (i32, i32, i32) {
    %c0_i32 = arith.constant 0 : i32
    %c0_i32_0 = arith.constant 0 : i32
    return %arg0, %arg1, %c0_i32 : i32, i32, i32
  }
  func.func @transform_2(%arg0: i32, %arg1: i32) -> (i32, i32, i32) {
    %c0_i32 = arith.constant 0 : i32
    %c0_i32_0 = arith.constant 0 : i32
    %c0_i32_1 = arith.constant 0 : i32
    return %arg0, %c0_i32, %c0_i32_0 : i32, i32, i32
  }
  func.func @transform_3(%arg0: i32, %arg1: i32) -> (i32, i32, i32) {
    %c0_i32 = arith.constant 0 : i32
    %c0_i32_0 = arith.constant 0 : i32
    return %arg0, %arg1, %c0_i32 : i32, i32, i32
  }
  func.func @transform_4(%arg0: i32, %arg1: i32) -> (i32, i32, i32) {
    %c0_i32 = arith.constant 0 : i32
    %c0_i32_0 = arith.constant 0 : i32
    return %arg0, %arg1, %c0_i32 : i32, i32, i32
  }
}

module attributes {stable_mosaic.version = 11 : i64} {
  func.func @_ce_kernel(%arg0: i32, %arg1: memref<128x8xf32, #tpu.memory_space<vmem>>, %arg2: memref<128x1xi32, #tpu.memory_space<vmem>>, %arg3: memref<128x1xf32, #tpu.memory_space<vmem>>) attributes {dimension_semantics = [#tpu.dimension_semantics<parallel>], iteration_bounds = array<i64: 2>, scalar_prefetch = 0 : i64, scratch_operands = 0 : i64, tpu.core_type = #tpu.core_type<tc>, window_params = [{transform_indices = @transform_0, window_bounds = array<i64: 128, 8>}, {transform_indices = @transform_1, window_bounds = array<i64: 128, 1>}, {transform_indices = @transform_2, window_bounds = array<i64: 128, 1>}]} {
    %c0 = arith.constant 0 : index
    %c0_0 = arith.constant 0 : index
    %0 = vector.load %arg1[%c0, %c0_0] : memref<128x8xf32, #tpu.memory_space<vmem>>, vector<128x8xf32>
    %cst = arith.constant 9.99999993E-9 : f32
    %1 = vector.broadcast %cst : f32 to vector<128x8xf32>
    %2 = arith.addf %0, %1 : vector<128x8xf32>
    %cst_1 = arith.constant dense<0xFF800000> : vector<128xf32>
    %3 = vector.multi_reduction <maximumf>, %2, %cst_1 [1] : vector<128x8xf32> to vector<128xf32>
    %4 = vector.shape_cast %3 : vector<128xf32> to vector<128x1xf32>
    %5 = vector.broadcast %4 : vector<128x1xf32> to vector<128x8xf32>
    %6 = arith.subf %2, %5 : vector<128x8xf32>
    %7 = math.exp %6 : vector<128x8xf32>
    %cst_2 = arith.constant dense<0.000000e+00> : vector<128xf32>
    %8 = vector.multi_reduction <add>, %7, %cst_2 [1] : vector<128x8xf32> to vector<128xf32>
    %9 = vector.shape_cast %8 : vector<128xf32> to vector<128x1xf32>
    %10 = math.log %9 : vector<128x1xf32>
    %11 = arith.addf %4, %10 : vector<128x1xf32>
    %12 = tpu.iota {dimensions = array<i32: 1>} : vector<128x8xi32>
    %c0_3 = arith.constant 0 : index
    %c0_4 = arith.constant 0 : index
    %13 = vector.load %arg2[%c0_3, %c0_4] : memref<128x1xi32, #tpu.memory_space<vmem>>, vector<128x1xi32>
    %14 = vector.broadcast %13 : vector<128x1xi32> to vector<128x8xi32>
    %15 = arith.cmpi eq, %12, %14 : vector<128x8xi32>
    %16 = arith.extui %15 : vector<128x8xi1> to vector<128x8xi32>
    %17 = arith.sitofp %16 : vector<128x8xi32> to vector<128x8xf32>
    %18 = arith.mulf %2, %17 : vector<128x8xf32>
    %cst_5 = arith.constant dense<0.000000e+00> : vector<128xf32>
    %19 = vector.multi_reduction <add>, %18, %cst_5 [1] : vector<128x8xf32> to vector<128xf32>
    %20 = vector.shape_cast %19 : vector<128xf32> to vector<128x1xf32>
    %21 = arith.subf %11, %20 : vector<128x1xf32>
    %c0_6 = arith.constant 0 : index
    %c0_7 = arith.constant 0 : index
    %22 = vector.load %arg3[%c0_6, %c0_7] : memref<128x1xf32, #tpu.memory_space<vmem>>, vector<128x1xf32>
    tpu.vector_store %arg3[%c0_6, %c0_7], %21 {strides = array<i32>} : memref<128x1xf32, #tpu.memory_space<vmem>>, vector<128x1xf32>,
    return
  }
  func.func @transform_0(%arg0: i32) -> (i32, i32) {
    %c0_i32 = arith.constant 0 : i32
    %c0_i32_0 = arith.constant 0 : i32
    return %arg0, %c0_i32 : i32, i32
  }
  func.func @transform_1(%arg0: i32) -> (i32, i32) {
    %c0_i32 = arith.constant 0 : i32
    %c0_i32_0 = arith.constant 0 : i32
    return %arg0, %c0_i32 : i32, i32
  }
  func.func @transform_2(%arg0: i32) -> (i32, i32) {
    %c0_i32 = arith.constant 0 : i32
    %c0_i32_0 = arith.constant 0 : i32
    return %arg0, %c0_i32 : i32, i32
  }
}

</mosaic_0001>

<llo_original>
// kernel: get_loss.2
$region0: #{get_loss.2}
  #allocation0 [shape = 'u32[]', space=smem, size = 0x4, offset = 0x4, fixed_abs, tag = 'smem constant byte address 0x4 - core index']
  #allocation1 [shape = 'u32[144,128]{1,0:T(1,128)}', space=vmem, size = 0x12000, scoped, tag = 'internal scratch']
  %s0 = inlined_call_operand.vmem [shape: f32[256,8], index: 0, kind: input, shape index: {}]
  %s1 = inlined_call_operand.vmem [shape: s32[256,1], index: 1, kind: input, shape index: {}]
  %s2 = inlined_call_operand.vmem [shape: f32[256,1], index: 2, kind: output, shape index: {}]
  %s3 = sld [smem:[#allocation0]]
  $region41: #{get_loss.2} parent=0
    _
  %s5 = ssub.s32 1, %s3
  %s6 = scalar_select 0, %s5, %s3
  loop: start=0, step=1, limit=4
  $region2: #{get_loss.2} parent=0 // loop_pre_header
    _
  $region3: #{get_loss.2} parent=0 // loop_header
    %s8 = sphi 0, %s12
    %p9 = scmp.ge.s32.totalorder %s8, 4
    %s18 = sphi 0, %s20
    %s21 = sphi 0, %s18
    %s22 = sphi 0, %s21
    %s38 = sphi 0, %s22
    %s44 = sphi 0, %s46
    %s47 = sphi 0, %s44
    %s48 = sphi 0, %s47
    %s64 = sphi 0, %s48
    %s70 = sphi 0, %s72
    %s73 = sphi 0, %s70
    %s74 = sphi 0, %s73
    %s90 = sphi 0, %s74
  $region4: #{get_loss.2} parent=0 // loop_header_branch
    %11 = sbr.rel (%p9) target = $region8
  $region5: #{get_loss.2} parent=0 // loop_body
    %s13 = ssub.s32 %s8, 1
    %s14 = ssub.s32 %s8, 2
    %s15 = sadd.s32 %s8, 1
    %s16 = ssub.s32 %s8, %s15
    %p17 = scmp.eq.s32.totalorder %s16, 0
    %s19 = sadd.s32 %s18, 1
    %s20 = scalar_select %p17, %s18, %s19
    %p23 = pneg %p17
    %p24 = scmp.eq.s32.totalorder %s8, 1
    %p25 = por %p23, %p24
    %p26 = scmp.ne.s32.totalorder %s18, %s21
    %p27 = scmp.eq.s32.totalorder %s8, 0
    %p28 = por %p26, %p27
    %p29 = scmp.ne.s32.totalorder %s18, %s21
    %p30 = scmp.eq.s32.totalorder %s13, 1
    %p31 = por %p29, %p30
    %p32 = scmp.ne.s32.totalorder %s21, %s22
    %p33 = scmp.eq.s32.totalorder %s13, 0
    %p34 = por %p32, %p33
    %p35 = scmp.ne.s32.totalorder %s21, %s22
    %p36 = scmp.eq.s32.totalorder %s14, 1
    %p37 = por %p35, %p36
    %p39 = scmp.ne.s32.totalorder %s22, %s38
    %p40 = scmp.eq.s32.totalorder %s14, 0
    %p41 = por %p39, %p40
    %s42 = ssub.s32 %s8, %s15
    %p43 = scmp.eq.s32.totalorder %s42, 0
    %s45 = sadd.s32 %s44, 1
    %s46 = scalar_select %p43, %s44, %s45
    %p49 = pneg %p43
    %p50 = scmp.eq.s32.totalorder %s8, 1
    %p51 = por %p49, %p50
    %p52 = scmp.ne.s32.totalorder %s44, %s47
    %p53 = scmp.eq.s32.totalorder %s8, 0
    %p54 = por %p52, %p53
    %p55 = scmp.ne.s32.totalorder %s44, %s47
    %p56 = scmp.eq.s32.totalorder %s13, 1
    %p57 = por %p55, %p56
    %p58 = scmp.ne.s32.totalorder %s47, %s48
    %p59 = scmp.eq.s32.totalorder %s13, 0
    %p60 = por %p58, %p59
    %p61 = scmp.ne.s32.totalorder %s47, %s48
    %p62 = scmp.eq.s32.totalorder %s14, 1
    %p63 = por %p61, %p62
    %p65 = scmp.ne.s32.totalorder %s48, %s64
    %p66 = scmp.eq.s32.totalorder %s14, 0
    %p67 = por %p65, %p66
    %s68 = ssub.s32 %s8, %s15
    %p69 = scmp.eq.s32.totalorder %s68, 0
    %s71 = sadd.s32 %s70, 1
    %s72 = scalar_select %p69, %s70, %s71
    %p75 = pneg %p69
    %p76 = scmp.eq.s32.totalorder %s8, 1
    %p77 = por %p75, %p76
    %p78 = scmp.ne.s32.totalorder %s70, %s73
    %p79 = scmp.eq.s32.totalorder %s8, 0
    %p80 = por %p78, %p79
    %p81 = scmp.ne.s32.totalorder %s70, %s73
    %p82 = scmp.eq.s32.totalorder %s13, 1
    %p83 = por %p81, %p82
    %p84 = scmp.ne.s32.totalorder %s73, %s74
    %p85 = scmp.eq.s32.totalorder %s13, 0
    %p86 = por %p84, %p85
    %p87 = scmp.ne.s32.totalorder %s73, %s74
    %p88 = scmp.eq.s32.totalorder %s14, 1
    %p89 = por %p87, %p88
    %p91 = scmp.ne.s32.totalorder %s74, %s90
    %p92 = scmp.eq.s32.totalorder %s14, 0
    %p93 = por %p91, %p92
    %p94 = scmp.le.s32.totalorder 1, %s8
    %p95 = scmp.lt.s32.totalorder %s8, 3
    %p96 = pnand %p94, %p95
    %p97 = pneg %p96
    // Predicated region
    $region9: #{get_loss.2} parent=5 // pred_check
      _
    $region10: #{get_loss.2} parent=5 // pred_check_branch
      %99 = sbr.rel (%p96) target = $region12
    $region11: #{get_loss.2} parent=5 // pred_region
      %s100 = ssub.s32 %s8, 1
    $region12: #{get_loss.2} parent=5 // pred_fallthru
      _
    %p101 = scmp.lt.s32.totalorder %s8, 2
    // Predicated region
    $region13: #{get_loss.2} parent=5 // pred_check
      %p102 = pneg %p101
    $region14: #{get_loss.2} parent=5 // pred_check_branch
      %104 = sbr.rel (%p102) target = $region16
    $region15: #{get_loss.2} parent=5 // pred_region
      // Predicated region
      $region17: #{get_loss.2} parent=15 // pred_check
        %p105 = pneg %p28
      $region18: #{get_loss.2} parent=15 // pred_check_branch
        %107 = sbr.rel (%p105) target = $region20
      $region19: #{get_loss.2} parent=15 // pred_region
        %s108 = smul.u32 16, %s8
        %p109 = scmp.lt.s32.totalorder %s108, 31
        %s110 = scalar_select %p109, %s108, 31
        %s111 = smul.addr %s110, 8
        %s112 = scalar_lea.vmem %s0, %s111
        %s113 = smul.u32 16, %s8
      $region20: #{get_loss.2} parent=15 // pred_fallthru
        _
      // Predicated region
      $region21: #{get_loss.2} parent=15 // pred_check
        %p114 = pneg %p54
      $region22: #{get_loss.2} parent=15 // pred_check_branch
        %116 = sbr.rel (%p114) target = $region24
      $region23: #{get_loss.2} parent=15 // pred_region
        %s117 = smul.u32 16, %s8
        %p118 = scmp.lt.s32.totalorder %s117, 31
        %s119 = scalar_select %p118, %s117, 31
        %s120 = smul.addr %s119, 8
        %s121 = scalar_lea.vmem %s1, %s120
        %s122 = smul.u32 16, %s8
      $region24: #{get_loss.2} parent=15 // pred_fallthru
        _
    $region16: #{get_loss.2} parent=5 // pred_fallthru
      _
    %p123 = scmp.le.s32.totalorder 1, %s8
    %p124 = scmp.lt.s32.totalorder %s8, 3
    %p125 = pnand %p123, %p124
    %p126 = pneg %p125
    // Predicated region
    $region25: #{get_loss.2} parent=5 // pred_check
      _
    $region26: #{get_loss.2} parent=5 // pred_check_branch
      %128 = sbr.rel (%p125) target = $region28
    $region27: #{get_loss.2} parent=5 // pred_region
      %s129 = ssub.s32 %s8, 1
      %s130 = smul.u32 16, %s13
      %p131 = scmp.lt.s32.totalorder %s130, 31
      %s132 = scalar_select %p131, %s130, 31
      %s133 = smul.addr %s132, 8
      %s134 = scalar_lea.vmem %s0, %s133
      %p135 = pneg %p34
      %p136 = pneg %p31
      %s137 = smul.u32 16, %s13
      %p138 = scmp.lt.s32.totalorder %s137, 31
      %s139 = scalar_select %p138, %s137, 31
      %s140 = smul.addr %s139, 8
      %s141 = scalar_lea.vmem %s1, %s140
      %p142 = pneg %p60
      %p143 = pneg %p57
      %p144 = pneg %p86
      %p145 = pneg %p83
      %s146 = smul.u32 16, %s13
      %p147 = scmp.lt.s32.totalorder %s146, 31
      %s148 = scalar_select %p147, %s146, 31
      %s149 = smul.addr %s148, 8
      %s150 = scalar_lea.vmem %s2, %s149
      %s151 = smul.u32 16, %s13
      %p152 = scmp.lt.s32.totalorder %s151, 31
      %s153 = scalar_select %p152, %s151, 31
      %s154 = smul.addr %s153, 8
      %s155 = scalar_lea.vmem %s0, %s154
      %s156 = smul.u32 16, %s13
      %s157 = smul.u32 16, %s13
      %p158 = scmp.lt.s32.totalorder %s157, 31
      %s159 = scalar_select %p158, %s157, 31
      %s160 = smul.addr %s159, 8
      %s161 = scalar_lea.vmem %s1, %s160
      %s162 = smul.u32 16, %s13
      %s163 = smul.u32 16, %s13
      %p164 = scmp.lt.s32.totalorder %s163, 31
      %s165 = scalar_select %p164, %s163, 31
      %s166 = smul.addr %s165, 8
      %s167 = scalar_lea.vmem %s2, %s166
      %s168 = smul.u32 16, %s13
      %v169 = vld [vmem:[%s155] sm:$0xff]
      %v170 = vld [vmem:[%s155 + $0x8] sm:$0xff]
      %v171 = vld [vmem:[%s155 + $0x10] sm:$0xff]
      %v172 = vld [vmem:[%s155 + $0x18] sm:$0xff]
      %v173 = vld [vmem:[%s155 + $0x20] sm:$0xff]
      %v174 = vld [vmem:[%s155 + $0x28] sm:$0xff]
      %v175 = vld [vmem:[%s155 + $0x30] sm:$0xff]
      %v176 = vld [vmem:[%s155 + $0x38] sm:$0xff]
      %v177 = vld [vmem:[%s155 + $0x40] sm:$0xff]
      %v178 = vld [vmem:[%s155 + $0x48] sm:$0xff]
      %v179 = vld [vmem:[%s155 + $0x50] sm:$0xff]
      %v180 = vld [vmem:[%s155 + $0x58] sm:$0xff]
      %v181 = vld [vmem:[%s155 + $0x60] sm:$0xff]
      %v182 = vld [vmem:[%s155 + $0x68] sm:$0xff]
      %v183 = vld [vmem:[%s155 + $0x70] sm:$0xff]
      %v184 = vld [vmem:[%s155 + $0x78] sm:$0xff]
      %v185 = vadd.f32 %v169, 1e-08
      %v186 = vadd.f32 %v170, 1e-08
      %v187 = vadd.f32 %v171, 1e-08
      %v188 = vadd.f32 %v172, 1e-08
      %v189 = vadd.f32 %v173, 1e-08
      %v190 = vadd.f32 %v174, 1e-08
      %v191 = vadd.f32 %v175, 1e-08
      %v192 = vadd.f32 %v176, 1e-08
      %v193 = vadd.f32 %v177, 1e-08
      %v194 = vadd.f32 %v178, 1e-08
      %v195 = vadd.f32 %v179, 1e-08
      %v196 = vadd.f32 %v180, 1e-08
      %v197 = vadd.f32 %v181, 1e-08
      %v198 = vadd.f32 %v182, 1e-08
      %v199 = vadd.f32 %v183, 1e-08
      %v200 = vadd.f32 %v184, 1e-08
      %vm201 = vcmask 64512
      %v202 = vsel %vm201, %v185, -inf
      %203 = vmax.xlane.f32.xlu0 %v202
      %v204 = vpop.xlane.xlu0 %203
      %v205 = vsel %vm201, %v186, -inf
      %206 = vmax.xlane.f32.xlu0 %v205
      %v207 = vpop.xlane.xlu0 %206
      %v208 = vsel %vm201, %v187, -inf
      %209 = vmax.xlane.f32.xlu0 %v208
      %v210 = vpop.xlane.xlu0 %209
      %v211 = vsel %vm201, %v188, -inf
      %212 = vmax.xlane.f32.xlu0 %v211
      %v213 = vpop.xlane.xlu0 %212
      %v214 = vsel %vm201, %v189, -inf
      %215 = vmax.xlane.f32.xlu0 %v214
      %v216 = vpop.xlane.xlu0 %215
      %v217 = vsel %vm201, %v190, -inf
      %218 = vmax.xlane.f32.xlu0 %v217
      %v219 = vpop.xlane.xlu0 %218
      %v220 = vsel %vm201, %v191, -inf
      %221 = vmax.xlane.f32.xlu0 %v220
      %v222 = vpop.xlane.xlu0 %221
      %v223 = vsel %vm201, %v192, -inf
      %224 = vmax.xlane.f32.xlu0 %v223
      %v225 = vpop.xlane.xlu0 %224
      %v226 = vsel %vm201, %v193, -inf
      %227 = vmax.xlane.f32.xlu0 %v226
      %v228 = vpop.xlane.xlu0 %227
      %v229 = vsel %vm201, %v194, -inf
      %230 = vmax.xlane.f32.xlu0 %v229
      %v231 = vpop.xlane.xlu0 %230
      %v232 = vsel %vm201, %v195, -inf
      %233 = vmax.xlane.f32.xlu0 %v232
      %v234 = vpop.xlane.xlu0 %233
      %v235 = vsel %vm201, %v196, -inf
      %236 = vmax.xlane.f32.xlu0 %v235
      %v237 = vpop.xlane.xlu0 %236
      %v238 = vsel %vm201, %v197, -inf
      %239 = vmax.xlane.f32.xlu0 %v238
      %v240 = vpop.xlane.xlu0 %239
      %v241 = vsel %vm201, %v198, -inf
      %242 = vmax.xlane.f32.xlu0 %v241
      %v243 = vpop.xlane.xlu0 %242
      %v244 = vsel %vm201, %v199, -inf
      %245 = vmax.xlane.f32.xlu0 %v244
      %v246 = vpop.xlane.xlu0 %245
      %v247 = vsel %vm201, %v200, -inf
      %248 = vmax.xlane.f32.xlu0 %v247
      %v249 = vpop.xlane.xlu0 %248
      %v250 = vsub.f32 %v185, %v204
      %v251 = vsub.f32 %v186, %v207
      %v252 = vsub.f32 %v187, %v210
      %v253 = vsub.f32 %v188, %v213
      %v254 = vsub.f32 %v189, %v216
      %v255 = vsub.f32 %v190, %v219
      %v256 = vsub.f32 %v191, %v222
      %v257 = vsub.f32 %v192, %v225
      %v258 = vsub.f32 %v193, %v228
      %v259 = vsub.f32 %v194, %v231
      %v260 = vsub.f32 %v195, %v234
      %v261 = vsub.f32 %v196, %v237
      %v262 = vsub.f32 %v197, %v240
      %v263 = vsub.f32 %v198, %v243
      %v264 = vsub.f32 %v199, %v246
      %v265 = vsub.f32 %v200, %v249
      %v266 = vmul.f32 %v250, 1.442695
      %v267 = vpow.pop %v266
      %v268 = vmul.f32 %v251, 1.442695
      %v269 = vpow.pop %v268
      %v270 = vmul.f32 %v252, 1.442695
      %v271 = vpow.pop %v270
      %v272 = vmul.f32 %v253, 1.442695
      %v273 = vpow.pop %v272
      %v274 = vmul.f32 %v254, 1.442695
      %v275 = vpow.pop %v274
      %v276 = vmul.f32 %v255, 1.442695
      %v277 = vpow.pop %v276
      %v278 = vmul.f32 %v256, 1.442695
      %v279 = vpow.pop %v278
      %v280 = vmul.f32 %v257, 1.442695
      %v281 = vpow.pop %v280
      %v282 = vmul.f32 %v258, 1.442695
      %v283 = vpow.pop %v282
      %v284 = vmul.f32 %v259, 1.442695
      %v285 = vpow.pop %v284
      %v286 = vmul.f32 %v260, 1.442695
      %v287 = vpow.pop %v286
      %v288 = vmul.f32 %v261, 1.442695
      %v289 = vpow.pop %v288
      %v290 = vmul.f32 %v262, 1.442695
      %v291 = vpow.pop %v290
      %v292 = vmul.f32 %v263, 1.442695
      %v293 = vpow.pop %v292
      %v294 = vmul.f32 %v264, 1.442695
      %v295 = vpow.pop %v294
      %v296 = vmul.f32 %v265, 1.442695
      %v297 = vpow.pop %v296
      %v298 = vsel %vm201, %v267, 0.0
      %299 = vadd.xlane.f32.xlu0 %v298
      %v300 = vpop.xlane.xlu0 %299
      %v301 = vsel %vm201, %v269, 0.0
      %302 = vadd.xlane.f32.xlu0 %v301
      %v303 = vpop.xlane.xlu0 %302
      %v304 = vsel %vm201, %v271, 0.0
      %305 = vadd.xlane.f32.xlu0 %v304
      %v306 = vpop.xlane.xlu0 %305
      %v307 = vsel %vm201, %v273, 0.0
      %308 = vadd.xlane.f32.xlu0 %v307
      %v309 = vpop.xlane.xlu0 %308
      %v310 = vsel %vm201, %v275, 0.0
      %311 = vadd.xlane.f32.xlu0 %v310
      %v312 = vpop.xlane.xlu0 %311
      %v313 = vsel %vm201, %v277, 0.0
      %314 = vadd.xlane.f32.xlu0 %v313
      %v315 = vpop.xlane.xlu0 %314
      %v316 = vsel %vm201, %v279, 0.0
      %317 = vadd.xlane.f32.xlu0 %v316
      %v318 = vpop.xlane.xlu0 %317
      %v319 = vsel %vm201, %v281, 0.0
      %320 = vadd.xlane.f32.xlu0 %v319
      %v321 = vpop.xlane.xlu0 %320
      %v322 = vsel %vm201, %v283, 0.0
      %323 = vadd.xlane.f32.xlu0 %v322
      %v324 = vpop.xlane.xlu0 %323
      %v325 = vsel %vm201, %v285, 0.0
      %326 = vadd.xlane.f32.xlu0 %v325
      %v327 = vpop.xlane.xlu0 %326
      %v328 = vsel %vm201, %v287, 0.0
      %329 = vadd.xlane.f32.xlu0 %v328
      %v330 = vpop.xlane.xlu0 %329
      %v331 = vsel %vm201, %v289, 0.0
      %332 = vadd.xlane.f32.xlu0 %v331
      %v333 = vpop.xlane.xlu0 %332
      %v334 = vsel %vm201, %v291, 0.0
      %335 = vadd.xlane.f32.xlu0 %v334
      %v336 = vpop.xlane.xlu0 %335
      %v337 = vsel %vm201, %v293, 0.0
      %338 = vadd.xlane.f32.xlu0 %v337
      %v339 = vpop.xlane.xlu0 %338
      %v340 = vsel %vm201, %v295, 0.0
      %341 = vadd.xlane.f32.xlu0 %v340
      %v342 = vpop.xlane.xlu0 %341
      %v343 = vsel %vm201, %v297, 0.0
      %344 = vadd.xlane.f32.xlu0 %v343
      %v345 = vpop.xlane.xlu0 %344
      %v346 = vlog2.pop %v300
      %v347 = vmul.f32 %v346, 0.6931472
      %v348 = vlog2.pop %v303
      %v349 = vmul.f32 %v348, 0.6931472
      %v350 = vlog2.pop %v306
      %v351 = vmul.f32 %v350, 0.6931472
      %v352 = vlog2.pop %v309
      %v353 = vmul.f32 %v352, 0.6931472
      %v354 = vlog2.pop %v312
      %v355 = vmul.f32 %v354, 0.6931472
      %v356 = vlog2.pop %v315
      %v357 = vmul.f32 %v356, 0.6931472
      %v358 = vlog2.pop %v318
      %v359 = vmul.f32 %v358, 0.6931472
      %v360 = vlog2.pop %v321
      %v361 = vmul.f32 %v360, 0.6931472
      %v362 = vlog2.pop %v324
      %v363 = vmul.f32 %v362, 0.6931472
      %v364 = vlog2.pop %v327
      %v365 = vmul.f32 %v364, 0.6931472
      %v366 = vlog2.pop %v330
      %v367 = vmul.f32 %v366, 0.6931472
      %v368 = vlog2.pop %v333
      %v369 = vmul.f32 %v368, 0.6931472
      %v370 = vlog2.pop %v336
      %v371 = vmul.f32 %v370, 0.6931472
      %v372 = vlog2.pop %v339
      %v373 = vmul.f32 %v372, 0.6931472
      %v374 = vlog2.pop %v342
      %v375 = vmul.f32 %v374, 0.6931472
      %v376 = vlog2.pop %v345
      %v377 = vmul.f32 %v376, 0.6931472
      %v378 = vadd.f32 %v204, %v347
      %v379 = vadd.f32 %v207, %v349
      %v380 = vadd.f32 %v210, %v351
      %v381 = vadd.f32 %v213, %v353
      %v382 = vadd.f32 %v216, %v355
      %v383 = vadd.f32 %v219, %v357
      %v384 = vadd.f32 %v222, %v359
      %v385 = vadd.f32 %v225, %v361
      %v386 = vadd.f32 %v228, %v363
      %v387 = vadd.f32 %v231, %v365
      %v388 = vadd.f32 %v234, %v367
      %v389 = vadd.f32 %v237, %v369
      %v390 = vadd.f32 %v240, %v371
      %v391 = vadd.f32 %v243, %v373
      %v392 = vadd.f32 %v246, %v375
      %v393 = vadd.f32 %v249, %v377
      %v394 = vlaneseq
      %v395 = vand.u32 %v394, 127
      %v396 = vld [vmem:[%s161] sm:$0xff]
      %v397 = vld [vmem:[%s161 + $0x8] sm:$0xff]
      %v398 = vld [vmem:[%s161 + $0x10] sm:$0xff]
      %v399 = vld [vmem:[%s161 + $0x18] sm:$0xff]
      %v400 = vld [vmem:[%s161 + $0x20] sm:$0xff]
      %v401 = vld [vmem:[%s161 + $0x28] sm:$0xff]
      %v402 = vld [vmem:[%s161 + $0x30] sm:$0xff]
      %v403 = vld [vmem:[%s161 + $0x38] sm:$0xff]
      %v404 = vld [vmem:[%s161 + $0x40] sm:$0xff]
      %v405 = vld [vmem:[%s161 + $0x48] sm:$0xff]
      %v406 = vld [vmem:[%s161 + $0x50] sm:$0xff]
      %v407 = vld [vmem:[%s161 + $0x58] sm:$0xff]
      %v408 = vld [vmem:[%s161 + $0x60] sm:$0xff]
      %v409 = vld [vmem:[%s161 + $0x68] sm:$0xff]
      %v410 = vld [vmem:[%s161 + $0x70] sm:$0xff]
      %v411 = vld [vmem:[%s161 + $0x78] sm:$0xff]
      %412 = vset.pattern.permute.xlu0 0
      %413 = vperm.xlu0 %412, %v396
      %v414 = vpop.permute.xlu0 %413
      %415 = vset.pattern.permute.xlu0 0
      %416 = vperm.xlu0 %415, %v397
      %v417 = vpop.permute.xlu0 %416
      %418 = vset.pattern.permute.xlu0 0
      %419 = vperm.xlu0 %418, %v398
      %v420 = vpop.permute.xlu0 %419
      %421 = vset.pattern.permute.xlu0 0
      %422 = vperm.xlu0 %421, %v399
      %v423 = vpop.permute.xlu0 %422
      %424 = vset.pattern.permute.xlu0 0
      %425 = vperm.xlu0 %424, %v400
      %v426 = vpop.permute.xlu0 %425
      %427 = vset.pattern.permute.xlu0 0
      %428 = vperm.xlu0 %427, %v401
      %v429 = vpop.permute.xlu0 %428
      %430 = vset.pattern.permute.xlu0 0
      %431 = vperm.xlu0 %430, %v402
      %v432 = vpop.permute.xlu0 %431
      %433 = vset.pattern.permute.xlu0 0
      %434 = vperm.xlu0 %433, %v403
      %v435 = vpop.permute.xlu0 %434
      %436 = vset.pattern.permute.xlu0 0
      %437 = vperm.xlu0 %436, %v404
      %v438 = vpop.permute.xlu0 %437
      %439 = vset.pattern.permute.xlu0 0
      %440 = vperm.xlu0 %439, %v405
      %v441 = vpop.permute.xlu0 %440
      %442 = vset.pattern.permute.xlu0 0
      %443 = vperm.xlu0 %442, %v406
      %v444 = vpop.permute.xlu0 %443
      %445 = vset.pattern.permute.xlu0 0
      %446 = vperm.xlu0 %445, %v407
      %v447 = vpop.permute.xlu0 %446
      %448 = vset.pattern.permute.xlu0 0
      %449 = vperm.xlu0 %448, %v408
      %v450 = vpop.permute.xlu0 %449
      %451 = vset.pattern.permute.xlu0 0
      %452 = vperm.xlu0 %451, %v409
      %v453 = vpop.permute.xlu0 %452
      %454 = vset.pattern.permute.xlu0 0
      %455 = vperm.xlu0 %454, %v410
      %v456 = vpop.permute.xlu0 %455
      %457 = vset.pattern.permute.xlu0 0
      %458 = vperm.xlu0 %457, %v411
      %v459 = vpop.permute.xlu0 %458
      %vm460 = vcmp.eq.s32.totalorder %v395, %v414
      %vm461 = vcmp.eq.s32.totalorder %v395, %v417
      %vm462 = vcmp.eq.s32.totalorder %v395, %v420
      %vm463 = vcmp.eq.s32.totalorder %v395, %v423
      %vm464 = vcmp.eq.s32.totalorder %v395, %v426
      %vm465 = vcmp.eq.s32.totalorder %v395, %v429
      %vm466 = vcmp.eq.s32.totalorder %v395, %v432
      %vm467 = vcmp.eq.s32.totalorder %v395, %v435
      %vm468 = vcmp.eq.s32.totalorder %v395, %v438
      %vm469 = vcmp.eq.s32.totalorder %v395, %v441
      %vm470 = vcmp.eq.s32.totalorder %v395, %v444
      %vm471 = vcmp.eq.s32.totalorder %v395, %v447
      %vm472 = vcmp.eq.s32.totalorder %v395, %v450
      %vm473 = vcmp.eq.s32.totalorder %v395, %v453
      %vm474 = vcmp.eq.s32.totalorder %v395, %v456
      %vm475 = vcmp.eq.s32.totalorder %v395, %v459
      %v476 = vsel %vm460, 1, 0
      %v477 = vsel %vm461, 1, 0
      %v478 = vsel %vm462, 1, 0
      %v479 = vsel %vm463, 1, 0
      %v480 = vsel %vm464, 1, 0
      %v481 = vsel %vm465, 1, 0
      %v482 = vsel %vm466, 1, 0
      %v483 = vsel %vm467, 1, 0
      %v484 = vsel %vm468, 1, 0
      %v485 = vsel %vm469, 1, 0
      %v486 = vsel %vm470, 1, 0
      %v487 = vsel %vm471, 1, 0
      %v488 = vsel %vm472, 1, 0
      %v489 = vsel %vm473, 1, 0
      %v490 = vsel %vm474, 1, 0
      %v491 = vsel %vm475, 1, 0
      %v492 = vcvt.s32.f32 %v476
      %v493 = vcvt.s32.f32 %v477
      %v494 = vcvt.s32.f32 %v478
      %v495 = vcvt.s32.f32 %v479
      %v496 = vcvt.s32.f32 %v480
      %v497 = vcvt.s32.f32 %v481
      %v498 = vcvt.s32.f32 %v482
      %v499 = vcvt.s32.f32 %v483
      %v500 = vcvt.s32.f32 %v484
      %v501 = vcvt.s32.f32 %v485
      %v502 = vcvt.s32.f32 %v486
      %v503 = vcvt.s32.f32 %v487
      %v504 = vcvt.s32.f32 %v488
      %v505 = vcvt.s32.f32 %v489
      %v506 = vcvt.s32.f32 %v490
      %v507 = vcvt.s32.f32 %v491
      %v508 = vmul.f32 %v185, %v492
      %v509 = vmul.f32 %v186, %v493
      %v510 = vmul.f32 %v187, %v494
      %v511 = vmul.f32 %v188, %v495
      %v512 = vmul.f32 %v189, %v496
      %v513 = vmul.f32 %v190, %v497
      %v514 = vmul.f32 %v191, %v498
      %v515 = vmul.f32 %v192, %v499
      %v516 = vmul.f32 %v193, %v500
      %v517 = vmul.f32 %v194, %v501
      %v518 = vmul.f32 %v195, %v502
      %v519 = vmul.f32 %v196, %v503
      %v520 = vmul.f32 %v197, %v504
      %v521 = vmul.f32 %v198, %v505
      %v522 = vmul.f32 %v199, %v506
      %v523 = vmul.f32 %v200, %v507
      %v524 = vsel %vm201, %v508, 0.0
      %525 = vadd.xlane.f32.xlu0 %v524
      %v526 = vpop.xlane.xlu0 %525
      %v527 = vsel %vm201, %v509, 0.0
      %528 = vadd.xlane.f32.xlu0 %v527
      %v529 = vpop.xlane.xlu0 %528
      %v530 = vsel %vm201, %v510, 0.0
      %531 = vadd.xlane.f32.xlu0 %v530
      %v532 = vpop.xlane.xlu0 %531
      %v533 = vsel %vm201, %v511, 0.0
      %534 = vadd.xlane.f32.xlu0 %v533
      %v535 = vpop.xlane.xlu0 %534
      %v536 = vsel %vm201, %v512, 0.0
      %537 = vadd.xlane.f32.xlu0 %v536
      %v538 = vpop.xlane.xlu0 %537
      %v539 = vsel %vm201, %v513, 0.0
      %540 = vadd.xlane.f32.xlu0 %v539
      %v541 = vpop.xlane.xlu0 %540
      %v542 = vsel %vm201, %v514, 0.0
      %543 = vadd.xlane.f32.xlu0 %v542
      %v544 = vpop.xlane.xlu0 %543
      %v545 = vsel %vm201, %v515, 0.0
      %546 = vadd.xlane.f32.xlu0 %v545
      %v547 = vpop.xlane.xlu0 %546
      %v548 = vsel %vm201, %v516, 0.0
      %549 = vadd.xlane.f32.xlu0 %v548
      %v550 = vpop.xlane.xlu0 %549
      %v551 = vsel %vm201, %v517, 0.0
      %552 = vadd.xlane.f32.xlu0 %v551
      %v553 = vpop.xlane.xlu0 %552
      %v554 = vsel %vm201, %v518, 0.0
      %555 = vadd.xlane.f32.xlu0 %v554
      %v556 = vpop.xlane.xlu0 %555
      %v557 = vsel %vm201, %v519, 0.0
      %558 = vadd.xlane.f32.xlu0 %v557
      %v559 = vpop.xlane.xlu0 %558
      %v560 = vsel %vm201, %v520, 0.0
      %561 = vadd.xlane.f32.xlu0 %v560
      %v562 = vpop.xlane.xlu0 %561
      %v563 = vsel %vm201, %v521, 0.0
      %564 = vadd.xlane.f32.xlu0 %v563
      %v565 = vpop.xlane.xlu0 %564
      %v566 = vsel %vm201, %v522, 0.0
      %567 = vadd.xlane.f32.xlu0 %v566
      %v568 = vpop.xlane.xlu0 %567
      %v569 = vsel %vm201, %v523, 0.0
      %570 = vadd.xlane.f32.xlu0 %v569
      %v571 = vpop.xlane.xlu0 %570
      %v572 = vsub.f32 %v378, %v526
      %v573 = vsub.f32 %v379, %v529
      %v574 = vsub.f32 %v380, %v532
      %v575 = vsub.f32 %v381, %v535
      %v576 = vsub.f32 %v382, %v538
      %v577 = vsub.f32 %v383, %v541
      %v578 = vsub.f32 %v384, %v544
      %v579 = vsub.f32 %v385, %v547
      %v580 = vsub.f32 %v386, %v550
      %v581 = vsub.f32 %v387, %v553
      %v582 = vsub.f32 %v388, %v556
      %v583 = vsub.f32 %v389, %v559
      %v584 = vsub.f32 %v390, %v562
      %v585 = vsub.f32 %v391, %v565
      %v586 = vsub.f32 %v392, %v568
      %v587 = vsub.f32 %v393, %v571
      %vm588 = vcmask 7168
      %589 = vst.msk [vmem:[%s167] sm:$0xff] %vm588, %v572
      %590 = vst.msk [vmem:[%s167 + $0x8] sm:$0xff] %vm588, %v573
      %591 = vst.msk [vmem:[%s167 + $0x10] sm:$0xff] %vm588, %v574
      %592 = vst.msk [vmem:[%s167 + $0x18] sm:$0xff] %vm588, %v575
      %593 = vst.msk [vmem:[%s167 + $0x20] sm:$0xff] %vm588, %v576
      %594 = vst.msk [vmem:[%s167 + $0x28] sm:$0xff] %vm588, %v577
      %595 = vst.msk [vmem:[%s167 + $0x30] sm:$0xff] %vm588, %v578
      %596 = vst.msk [vmem:[%s167 + $0x38] sm:$0xff] %vm588, %v579
      %597 = vst.msk [vmem:[%s167 + $0x40] sm:$0xff] %vm588, %v580
      %598 = vst.msk [vmem:[%s167 + $0x48] sm:$0xff] %vm588, %v581
      %599 = vst.msk [vmem:[%s167 + $0x50] sm:$0xff] %vm588, %v582
      %600 = vst.msk [vmem:[%s167 + $0x58] sm:$0xff] %vm588, %v583
      %601 = vst.msk [vmem:[%s167 + $0x60] sm:$0xff] %vm588, %v584
      %602 = vst.msk [vmem:[%s167 + $0x68] sm:$0xff] %vm588, %v585
      %603 = vst.msk [vmem:[%s167 + $0x70] sm:$0xff] %vm588, %v586
      %604 = vst.msk [vmem:[%s167 + $0x78] sm:$0xff] %vm588, %v587
      %s605 = smul.u32 16, %s13
      %p606 = scmp.lt.s32.totalorder %s605, 31
      %s607 = scalar_select %p606, %s605, 31
      %s608 = smul.addr %s607, 8
      %s609 = scalar_lea.vmem %s2, %s608
      // Predicated region
      $region29: #{get_loss.2} parent=27 // pred_check
        %p610 = pneg %p83
      $region30: #{get_loss.2} parent=27 // pred_check_branch
        %612 = sbr.rel (%p610) target = $region32
      $region31: #{get_loss.2} parent=27 // pred_region
        %s613 = smul.u32 16, %s13
      $region32: #{get_loss.2} parent=27 // pred_fallthru
        _
    $region28: #{get_loss.2} parent=5 // pred_fallthru
      _
    %p614 = scmp.le.s32.totalorder 2, %s8
    // Predicated region
    $region33: #{get_loss.2} parent=5 // pred_check
      %p615 = pneg %p614
    $region34: #{get_loss.2} parent=5 // pred_check_branch
      %617 = sbr.rel (%p615) target = $region36
    $region35: #{get_loss.2} parent=5 // pred_region
      %s618 = ssub.s32 %s8, 2
      // Predicated region
      $region37: #{get_loss.2} parent=35 // pred_check
        %p619 = pneg %p89
      $region38: #{get_loss.2} parent=35 // pred_check_branch
        %621 = sbr.rel (%p619) target = $region40
      $region39: #{get_loss.2} parent=35 // pred_region
        %s622 = smul.u32 16, %s14
        %p623 = scmp.lt.s32.totalorder %s622, 31
        %s624 = scalar_select %p623, %s622, 31
        %s625 = smul.addr %s624, 8
        %s626 = scalar_lea.vmem %s2, %s625
      $region40: #{get_loss.2} parent=35 // pred_fallthru
        _
    $region36: #{get_loss.2} parent=5 // pred_fallthru
      _
  $region6: #{get_loss.2} parent=0 // loop_footer
    %s12 = sadd.s32 1, %s8
  $region7: #{get_loss.2} parent=0 // loop_footer_branch
    %7 = sbr.rel target = $region3
  $region8: #{get_loss.2} parent=0 // loop_exit
    _

// kernel: get_loss.3
$region0: #{get_loss.3}
  #allocation0 [shape = 'u32[]', space=smem, size = 0x4, offset = 0x4, fixed_abs, tag = 'smem constant byte address 0x4 - core index']
  #allocation1 [shape = 'u32[144,128]{1,0:T(1,128)}', space=vmem, size = 0x12000, scoped, tag = 'internal scratch']
  %s0 = inlined_call_operand.hbm [shape: f32[2,256,256], index: 0, kind: input, shape index: {}]
  %s1 = inlined_call_operand.vmem [shape: f32[2,256,16], index: 1, kind: input, shape index: {}, may-alias: {1,2}]
  %s2 = inlined_call_operand.vmem [shape: f32[2,256,16], index: 2, kind: input, shape index: {}, may-alias: {1,2}]
  %s3 = inlined_call_operand.vmem [shape: f32[2,256,1], index: 3, kind: output, shape index: {0}]
  %s4 = inlined_call_operand.vmem [shape: f32[2,256,1], index: 4, kind: output, shape index: {1}]
  %5 = xla_tuple %s3, %s4
  %s6 = sld [smem:[#allocation0]]
  $region57: #{get_loss.3} parent=0
    _
  %s8 = ssub.s32 1, %s6
  %s9 = scalar_select 0, %s8, %s6
  $region1: #{get_loss.3} parent=0
    #allocation2 [shape = 'u8[262144]{0}', space=vmem, size = 0x40000, scoped, tag = 'input window, operand 0']
    #allocation3 [shape = 's32[2]{0}', space=sflag, size = 0x8, scoped, tag = 'scoped memory for get_loss.3']
    %10 = vsyncpa [#allocation3], 0
    %s11 = scalar_lea.sflag [#allocation3], 1
    %12 = vsyncpa %s11, 0
    loop: start=0, step=1, limit=6
    $region2: #{get_loss.3} parent=1 // loop_pre_header
      _
    $region3: #{get_loss.3} parent=1 // loop_header
      %s14 = sphi 0, %s18
      %p15 = scmp.ge.s32.totalorder %s14, 6
      %s21 = sphi 0, %s33
      %s22 = sphi 0, %s29
      %s23 = sphi 0, %s21
      %s24 = sphi 0, %s22
      %s25 = sphi 0, %s23
      %s26 = sphi 0, %s24
      %s38 = sphi 0, %s40
      %s41 = sphi 0, %s38
      %s42 = sphi 0, %s41
      %s58 = sphi 0, %s42
      %s66 = sphi 0, %s68
      %s69 = sphi 0, %s66
      %s70 = sphi 0, %s69
      %s86 = sphi 0, %s70
      %s92 = sphi 0, %s94
      %s95 = sphi 0, %s92
      %s96 = sphi 0, %s95
      %s112 = sphi 0, %s96
      %s120 = sphi 0, %s122
      %s123 = sphi 0, %s120
      %s124 = sphi 0, %s123
      %s140 = sphi 0, %s124
      %s148 = sphi 0, %s150
      %s151 = sphi 0, %s148
      %s152 = sphi 0, %s151
      %s168 = sphi 0, %s152
    $region4: #{get_loss.3} parent=1 // loop_header_branch
      %17 = sbr.rel (%p15) target = $region8
    $region5: #{get_loss.3} parent=1 // loop_body
      %s19 = ssub.s32 %s14, 1
      %s20 = ssub.s32 %s14, 2
      %s27 = sadd.s32 1, %s22
      %p28 = scmp.ge.s32.totalorder %s27, 2
      %s29 = scalar_select %p28, 0, %s27
      %s30 = sadd.s32 1, %s21
      %s31 = scalar_select %p28, %s30, %s21
      %p32 = scmp.ge.s32.totalorder %s31, 2
      %s33 = scalar_select %p32, 0, %s31
      %s34 = ssub.s32 %s21, %s33
      %s35 = ssub.s32 %s22, %s29
      %s36 = sor.u32 %s34, %s35
      %p37 = scmp.eq.s32.totalorder %s36, 0
      %s39 = sadd.s32 %s38, 1
      %s40 = scalar_select %p37, %s38, %s39
      %p43 = pneg %p37
      %p44 = scmp.eq.s32.totalorder %s14, 3
      %p45 = por %p43, %p44
      %p46 = scmp.ne.s32.totalorder %s38, %s41
      %p47 = scmp.eq.s32.totalorder %s14, 0
      %p48 = por %p46, %p47
      %p49 = scmp.ne.s32.totalorder %s38, %s41
      %p50 = scmp.eq.s32.totalorder %s19, 3
      %p51 = por %p49, %p50
      %p52 = scmp.ne.s32.totalorder %s41, %s42
      %p53 = scmp.eq.s32.totalorder %s19, 0
      %p54 = por %p52, %p53
      %p55 = scmp.ne.s32.totalorder %s41, %s42
      %p56 = scmp.eq.s32.totalorder %s20, 3
      %p57 = por %p55, %p56
      %p59 = scmp.ne.s32.totalorder %s42, %s58
      %p60 = scmp.eq.s32.totalorder %s20, 0
      %p61 = por %p59, %p60
      %s62 = ssub.s32 %s21, %s33
      %s63 = ssub.s32 %s22, %s29
      %s64 = sor.u32 %s62, %s63
      %p65 = scmp.eq.s32.totalorder %s64, 0
      %s67 = sadd.s32 %s66, 1
      %s68 = scalar_select %p65, %s66, %s67
      %p71 = pneg %p65
      %p72 = scmp.eq.s32.totalorder %s14, 3
      %p73 = por %p71, %p72
      %p74 = scmp.ne.s32.totalorder %s66, %s69
      %p75 = scmp.eq.s32.totalorder %s14, 0
      %p76 = por %p74, %p75
      %p77 = scmp.ne.s32.totalorder %s66, %s69
      %p78 = scmp.eq.s32.totalorder %s19, 3
      %p79 = por %p77, %p78
      %p80 = scmp.ne.s32.totalorder %s69, %s70
      %p81 = scmp.eq.s32.totalorder %s19, 0
      %p82 = por %p80, %p81
      %p83 = scmp.ne.s32.totalorder %s69, %s70
      %p84 = scmp.eq.s32.totalorder %s20, 3
      %p85 = por %p83, %p84
      %p87 = scmp.ne.s32.totalorder %s70, %s86
      %p88 = scmp.eq.s32.totalorder %s20, 0
      %p89 = por %p87, %p88
      %s90 = ssub.s32 %s21, %s33
      %p91 = scmp.eq.s32.totalorder %s90, 0
      %s93 = sadd.s32 %s92, 1
      %s94 = scalar_select %p91, %s92, %s93
      %p97 = pneg %p91
      %p98 = scmp.eq.s32.totalorder %s14, 3
      %p99 = por %p97, %p98
      %p100 = scmp.ne.s32.totalorder %s92, %s95
      %p101 = scmp.eq.s32.totalorder %s14, 0
      %p102 = por %p100, %p101
      %p103 = scmp.ne.s32.totalorder %s92, %s95
      %p104 = scmp.eq.s32.totalorder %s19, 3
      %p105 = por %p103, %p104
      %p106 = scmp.ne.s32.totalorder %s95, %s96
      %p107 = scmp.eq.s32.totalorder %s19, 0
      %p108 = por %p106, %p107
      %p109 = scmp.ne.s32.totalorder %s95, %s96
      %p110 = scmp.eq.s32.totalorder %s20, 3
      %p111 = por %p109, %p110
      %p113 = scmp.ne.s32.totalorder %s96, %s112
      %p114 = scmp.eq.s32.totalorder %s20, 0
      %p115 = por %p113, %p114
      %s116 = ssub.s32 %s21, %s33
      %s117 = ssub.s32 %s22, %s29
      %s118 = sor.u32 %s116, %s117
      %p119 = scmp.eq.s32.totalorder %s118, 0
      %s121 = sadd.s32 %s120, 1
      %s122 = scalar_select %p119, %s120, %s121
      %p125 = pneg %p119
      %p126 = scmp.eq.s32.totalorder %s14, 3
      %p127 = por %p125, %p126
      %p128 = scmp.ne.s32.totalorder %s120, %s123
      %p129 = scmp.eq.s32.totalorder %s14, 0
      %p130 = por %p128, %p129
      %p131 = scmp.ne.s32.totalorder %s120, %s123
      %p132 = scmp.eq.s32.totalorder %s19, 3
      %p133 = por %p131, %p132
      %p134 = scmp.ne.s32.totalorder %s123, %s124
      %p135 = scmp.eq.s32.totalorder %s19, 0
      %p136 = por %p134, %p135
      %p137 = scmp.ne.s32.totalorder %s123, %s124
      %p138 = scmp.eq.s32.totalorder %s20, 3
      %p139 = por %p137, %p138
      %p141 = scmp.ne.s32.totalorder %s124, %s140
      %p142 = scmp.eq.s32.totalorder %s20, 0
      %p143 = por %p141, %p142
      %s144 = ssub.s32 %s21, %s33
      %s145 = ssub.s32 %s22, %s29
      %s146 = sor.u32 %s144, %s145
      %p147 = scmp.eq.s32.totalorder %s146, 0
      %s149 = sadd.s32 %s148, 1
      %s150 = scalar_select %p147, %s148, %s149
      %p153 = pneg %p147
      %p154 = scmp.eq.s32.totalorder %s14, 3
      %p155 = por %p153, %p154
      %p156 = scmp.ne.s32.totalorder %s148, %s151
      %p157 = scmp.eq.s32.totalorder %s14, 0
      %p158 = por %p156, %p157
      %p159 = scmp.ne.s32.totalorder %s148, %s151
      %p160 = scmp.eq.s32.totalorder %s19, 3
      %p161 = por %p159, %p160
      %p162 = scmp.ne.s32.totalorder %s151, %s152
      %p163 = scmp.eq.s32.totalorder %s19, 0
      %p164 = por %p162, %p163
      %p165 = scmp.ne.s32.totalorder %s151, %s152
      %p166 = scmp.eq.s32.totalorder %s20, 3
      %p167 = por %p165, %p166
      %p169 = scmp.ne.s32.totalorder %s152, %s168
      %p170 = scmp.eq.s32.totalorder %s20, 0
      %p171 = por %p169, %p170
      %p172 = scmp.le.s32.totalorder 1, %s14
      %p173 = scmp.lt.s32.totalorder %s14, 5
      %p174 = pnand %p172, %p173
      %p175 = pneg %p174
      // Predicated region
      $region9: #{get_loss.3} parent=5 // pred_check
        _
      $region10: #{get_loss.3} parent=5 // pred_check_branch
        %177 = sbr.rel (%p174) target = $region12
      $region11: #{get_loss.3} parent=5 // pred_region
        %s178 = ssub.s32 %s14, 1
      $region12: #{get_loss.3} parent=5 // pred_fallthru
        _
      %p179 = scmp.lt.s32.totalorder %s14, 4
      // Predicated region
      $region13: #{get_loss.3} parent=5 // pred_check
        %p180 = pneg %p179
      $region14: #{get_loss.3} parent=5 // pred_check_branch
        %182 = sbr.rel (%p180) target = $region16
      $region15: #{get_loss.3} parent=5 // pred_region
        // Predicated region
        $region17: #{get_loss.3} parent=15 // pred_check
          %p183 = pneg %p48
        $region18: #{get_loss.3} parent=15 // pred_check_branch
          %185 = sbr.rel (%p183) target = $region20
        $region19: #{get_loss.3} parent=15 // pred_region
          %s186 = sand.u32 %s38, 1
          %s187 = scalar_lea.sflag [#allocation3], %s186
          %s188 = sand.u32 %s38, 1
          %s189 = smul.addr %s188, 256
          %s190 = scalar_lea.vmem [#allocation2], %s189
          %s191 = smul.u32 16, %s22
          %s193 = ssub.s32 4096, 4096
          %194 = vsyncadd %s187, %s193
          %s195 = smul.addr %s191, 2
          %s196 = smul.addr %s21, 64
          %s197 = sadd.s32 %s195, %s196
          %s198 = smul.addr %s197, 128
          %s199 = scalar_lea.hbm %s0, %s198
          %s200 = sshll.u32 %s190, 4
          %s201 = int_to_ptr.vmem [resolvable:$true] %s200
          %206 = dma.hbm_to_vmem [thread:$0]  %s199, 4096, %s201, %s187, 256, 256, 16
        $region20: #{get_loss.3} parent=15 // pred_fallthru
          _
        // Predicated region
        $region21: #{get_loss.3} parent=15 // pred_check
          %p207 = pneg %p76
        $region22: #{get_loss.3} parent=15 // pred_check_branch
          %209 = sbr.rel (%p207) target = $region24
        $region23: #{get_loss.3} parent=15 // pred_region
          %s210 = smul.u32 16, %s22
          %p211 = scmp.lt.s32.totalorder %s21, 1
          %s212 = scalar_select %p211, %s21, 1
          %p213 = scmp.lt.s32.totalorder %s210, 31
          %s214 = scalar_select %p213, %s210, 31
          %s215 = smul.addr %s212, 32
          %s216 = sadd.s32 %s214, %s215
          %s217 = smul.addr %s216, 8
          %s218 = scalar_lea.vmem %s1, %s217
          %s219 = smul.u32 16, %s22
        $region24: #{get_loss.3} parent=15 // pred_fallthru
          _
        // Predicated region
        $region25: #{get_loss.3} parent=15 // pred_check
          %p220 = pneg %p102
        $region26: #{get_loss.3} parent=15 // pred_check_branch
          %222 = sbr.rel (%p220) target = $region28
        $region27: #{get_loss.3} parent=15 // pred_region
          %p223 = scmp.lt.s32.totalorder %s21, 1
          %s224 = scalar_select %p223, %s21, 1
          %s225 = smul.addr %s224, 32
          %s226 = smul.addr %s225, 8
          %s227 = scalar_lea.vmem %s2, %s226
        $region28: #{get_loss.3} parent=15 // pred_fallthru
          _
      $region16: #{get_loss.3} parent=5 // pred_fallthru
        _
      %p228 = scmp.le.s32.totalorder 1, %s14
      %p229 = scmp.lt.s32.totalorder %s14, 5
      %p230 = pnand %p228, %p229
      %p231 = pneg %p230
      // Predicated region
      $region29: #{get_loss.3} parent=5 // pred_check
        _
      $region30: #{get_loss.3} parent=5 // pred_check_branch
        %233 = sbr.rel (%p230) target = $region32
      $region31: #{get_loss.3} parent=5 // pred_region
        %s234 = ssub.s32 %s14, 1
        %s235 = sand.u32 %s41, 1
        %s236 = scalar_lea.sflag [#allocation3], %s235
        %s237 = sand.u32 %s41, 1
        %s238 = smul.addr %s237, 256
        %s239 = scalar_lea.vmem [#allocation2], %s238
        // Predicated region
        $region33: #{get_loss.3} parent=31 // pred_check
          %p240 = pneg %p54
        $region34: #{get_loss.3} parent=31 // pred_check_branch
          %242 = sbr.rel (%p240) target = $region36
        $region35: #{get_loss.3} parent=31 // pred_region
          %243 = dma.done %s236, 4096
        $region36: #{get_loss.3} parent=31 // pred_fallthru
          _
        %s244 = sand.u32 %s41, 1
        %s245 = scalar_lea.sflag [#allocation3], %s244
        %s246 = sand.u32 %s41, 1
        %s247 = smul.addr %s246, 256
        %s248 = scalar_lea.vmem [#allocation2], %s247
        %p249 = pneg %p54
        %p250 = pneg %p51
        %s251 = smul.u32 16, %s24
        %p252 = scmp.lt.s32.totalorder %s23, 1
        %s253 = scalar_select %p252, %s23, 1
        %p254 = scmp.lt.s32.totalorder %s251, 31
        %s255 = scalar_select %p254, %s251, 31
        %s256 = smul.addr %s253, 32
        %s257 = sadd.s32 %s255, %s256
        %s258 = smul.addr %s257, 8
        %s259 = scalar_lea.vmem %s1, %s258
        %p260 = pneg %p82
        %p261 = pneg %p79
        %p262 = scmp.lt.s32.totalorder %s23, 1
        %s263 = scalar_select %p262, %s23, 1
        %s264 = smul.addr %s263, 32
        %s265 = smul.addr %s264, 8
        %s266 = scalar_lea.vmem %s2, %s265
        %p267 = pneg %p108
        %p268 = pneg %p105
        %p269 = pneg %p136
        %p270 = pneg %p133
        %s271 = smul.u32 16, %s24
        %p272 = scmp.lt.s32.totalorder %s23, 1
        %s273 = scalar_select %p272, %s23, 1
        %p274 = scmp.lt.s32.totalorder %s271, 31
        %s275 = scalar_select %p274, %s271, 31
        %s276 = smul.addr %s273, 32
        %s277 = sadd.s32 %s275, %s276
        %s278 = smul.addr %s277, 8
        %s279 = scalar_lea.vmem %s3, %s278
        %p280 = pneg %p164
        %p281 = pneg %p161
        %s282 = smul.u32 16, %s24
        %p283 = scmp.lt.s32.totalorder %s23, 1
        %s284 = scalar_select %p283, %s23, 1
        %p285 = scmp.lt.s32.totalorder %s282, 31
        %s286 = scalar_select %p285, %s282, 31
        %s287 = smul.addr %s284, 32
        %s288 = sadd.s32 %s286, %s287
        %s289 = smul.addr %s288, 8
        %s290 = scalar_lea.vmem %s4, %s289
        %s291 = smul.u32 16, %s24
        %s292 = smul.u32 16, %s24
        %p293 = scmp.lt.s32.totalorder %s23, 1
        %s294 = scalar_select %p293, %s23, 1
        %p295 = scmp.lt.s32.totalorder %s292, 31
        %s296 = scalar_select %p295, %s292, 31
        %s297 = smul.addr %s294, 32
        %s298 = sadd.s32 %s296, %s297
        %s299 = smul.addr %s298, 8
        %s300 = scalar_lea.vmem %s1, %s299
        %s301 = smul.u32 16, %s24
        %p302 = scmp.lt.s32.totalorder %s23, 1
        %s303 = scalar_select %p302, %s23, 1
        %s304 = smul.addr %s303, 32
        %s305 = smul.addr %s304, 8
        %s306 = scalar_lea.vmem %s2, %s305
        %s307 = smul.u32 16, %s24
        %p308 = scmp.lt.s32.totalorder %s23, 1
        %s309 = scalar_select %p308, %s23, 1
        %p310 = scmp.lt.s32.totalorder %s307, 31
        %s311 = scalar_select %p310, %s307, 31
        %s312 = smul.addr %s309, 32
        %s313 = sadd.s32 %s311, %s312
        %s314 = smul.addr %s313, 8
        %s315 = scalar_lea.vmem %s3, %s314
        %s316 = smul.u32 16, %s24
        %s317 = smul.u32 16, %s24
        %p318 = scmp.lt.s32.totalorder %s23, 1
        %s319 = scalar_select %p318, %s23, 1
        %p320 = scmp.lt.s32.totalorder %s317, 31
        %s321 = scalar_select %p320, %s317, 31
        %s322 = smul.addr %s319, 32
        %s323 = sadd.s32 %s321, %s322
        %s324 = smul.addr %s323, 8
        %s325 = scalar_lea.vmem %s4, %s324
        %s326 = smul.u32 16, %s24
        %v328 = vld [vmem:[%s239] sm:$0xff]
        %v329 = vld [vmem:[%s239 + $0x8] sm:$0xff]
        %v330 = vld [vmem:[%s239 + $0x10] sm:$0xff]
        %v331 = vld [vmem:[%s239 + $0x18] sm:$0xff]
        %v332 = vld [vmem:[%s239 + $0x20] sm:$0xff]
        %v333 = vld [vmem:[%s239 + $0x28] sm:$0xff]
        %v334 = vld [vmem:[%s239 + $0x30] sm:$0xff]
        %v335 = vld [vmem:[%s239 + $0x38] sm:$0xff]
        %v336 = vld [vmem:[%s239 + $0x40] sm:$0xff]
        %v337 = vld [vmem:[%s239 + $0x48] sm:$0xff]
        %v338 = vld [vmem:[%s239 + $0x50] sm:$0xff]
        %v339 = vld [vmem:[%s239 + $0x58] sm:$0xff]
        %v340 = vld [vmem:[%s239 + $0x60] sm:$0xff]
        %v341 = vld [vmem:[%s239 + $0x68] sm:$0xff]
        %v342 = vld [vmem:[%s239 + $0x70] sm:$0xff]
        %v343 = vld [vmem:[%s239 + $0x78] sm:$0xff]
        %v344 = vld [vmem:[%s239 + $0x80] sm:$0xff]
        %v345 = vld [vmem:[%s239 + $0x88] sm:$0xff]
        %v346 = vld [vmem:[%s239 + $0x90] sm:$0xff]
        %v347 = vld [vmem:[%s239 + $0x98] sm:$0xff]
        %v348 = vld [vmem:[%s239 + $0xa0] sm:$0xff]
        %v349 = vld [vmem:[%s239 + $0xa8] sm:$0xff]
        %v350 = vld [vmem:[%s239 + $0xb0] sm:$0xff]
        %v351 = vld [vmem:[%s239 + $0xb8] sm:$0xff]
        %v352 = vld [vmem:[%s239 + $0xc0] sm:$0xff]
        %v353 = vld [vmem:[%s239 + $0xc8] sm:$0xff]
        %v354 = vld [vmem:[%s239 + $0xd0] sm:$0xff]
        %v355 = vld [vmem:[%s239 + $0xd8] sm:$0xff]
        %v356 = vld [vmem:[%s239 + $0xe0] sm:$0xff]
        %v357 = vld [vmem:[%s239 + $0xe8] sm:$0xff]
        %v358 = vld [vmem:[%s239 + $0xf0] sm:$0xff]
        %v359 = vld [vmem:[%s239 + $0xf8] sm:$0xff]
        %v360 = vld [vmem:[%s300] sm:$0xff]
        %v361 = vld [vmem:[%s300 + $0x8] sm:$0xff]
        %v362 = vld [vmem:[%s300 + $0x10] sm:$0xff]
        %v363 = vld [vmem:[%s300 + $0x18] sm:$0xff]
        %v364 = vld [vmem:[%s300 + $0x20] sm:$0xff]
        %v365 = vld [vmem:[%s300 + $0x28] sm:$0xff]
        %v366 = vld [vmem:[%s300 + $0x30] sm:$0xff]
        %v367 = vld [vmem:[%s300 + $0x38] sm:$0xff]
        %v368 = vld [vmem:[%s300 + $0x40] sm:$0xff]
        %v369 = vld [vmem:[%s300 + $0x48] sm:$0xff]
        %v370 = vld [vmem:[%s300 + $0x50] sm:$0xff]
        %v371 = vld [vmem:[%s300 + $0x58] sm:$0xff]
        %v372 = vld [vmem:[%s300 + $0x60] sm:$0xff]
        %v373 = vld [vmem:[%s300 + $0x68] sm:$0xff]
        %v374 = vld [vmem:[%s300 + $0x70] sm:$0xff]
        %v375 = vld [vmem:[%s300 + $0x78] sm:$0xff]
        %v376 = vpack.c.bf16 %v361, %v360
        %v377 = vpack.c.bf16 %v363, %v362
        %v378 = vpack.c.bf16 %v365, %v364
        %v379 = vpack.c.bf16 %v367, %v366
        %v380 = vpack.c.bf16 %v369, %v368
        %v381 = vpack.c.bf16 %v371, %v370
        %v382 = vpack.c.bf16 %v373, %v372
        %v383 = vpack.c.bf16 %v375, %v374
        %v384 = vld [vmem:[%s306] sm:$0xff]
        %v385 = vld [vmem:[%s306 + $0x8] sm:$0xff]
        %v386 = vld [vmem:[%s306 + $0x10] sm:$0xff]
        %v387 = vld [vmem:[%s306 + $0x18] sm:$0xff]
        %v388 = vld [vmem:[%s306 + $0x20] sm:$0xff]
        %v389 = vld [vmem:[%s306 + $0x28] sm:$0xff]
        %v390 = vld [vmem:[%s306 + $0x30] sm:$0xff]
        %v391 = vld [vmem:[%s306 + $0x38] sm:$0xff]
        %v392 = vld [vmem:[%s306 + $0x40] sm:$0xff]
        %v393 = vld [vmem:[%s306 + $0x48] sm:$0xff]
        %v394 = vld [vmem:[%s306 + $0x50] sm:$0xff]
        %v395 = vld [vmem:[%s306 + $0x58] sm:$0xff]
        %v396 = vld [vmem:[%s306 + $0x60] sm:$0xff]
        %v397 = vld [vmem:[%s306 + $0x68] sm:$0xff]
        %v398 = vld [vmem:[%s306 + $0x70] sm:$0xff]
        %v399 = vld [vmem:[%s306 + $0x78] sm:$0xff]
        %v400 = vld [vmem:[%s306 + $0x80] sm:$0xff]
        %v401 = vld [vmem:[%s306 + $0x88] sm:$0xff]
        %v402 = vld [vmem:[%s306 + $0x90] sm:$0xff]
        %v403 = vld [vmem:[%s306 + $0x98] sm:$0xff]
        %v404 = vld [vmem:[%s306 + $0xa0] sm:$0xff]
        %v405 = vld [vmem:[%s306 + $0xa8] sm:$0xff]
        %v406 = vld [vmem:[%s306 + $0xb0] sm:$0xff]
        %v407 = vld [vmem:[%s306 + $0xb8] sm:$0xff]
        %v408 = vld [vmem:[%s306 + $0xc0] sm:$0xff]
        %v409 = vld [vmem:[%s306 + $0xc8] sm:$0xff]
        %v410 = vld [vmem:[%s306 + $0xd0] sm:$0xff]
        %v411 = vld [vmem:[%s306 + $0xd8] sm:$0xff]
        %v412 = vld [vmem:[%s306 + $0xe0] sm:$0xff]
        %v413 = vld [vmem:[%s306 + $0xe8] sm:$0xff]
        %v414 = vld [vmem:[%s306 + $0xf0] sm:$0xff]
        %v415 = vld [vmem:[%s306 + $0xf8] sm:$0xff]
        %v416 = vpack.c.bf16 %v385, %v384
        %v417 = vpack.c.bf16 %v387, %v386
        %v418 = vpack.c.bf16 %v389, %v388
        %v419 = vpack.c.bf16 %v391, %v390
        %v420 = vpack.c.bf16 %v393, %v392
        %v421 = vpack.c.bf16 %v395, %v394
        %v422 = vpack.c.bf16 %v397, %v396
        %v423 = vpack.c.bf16 %v399, %v398
        %v424 = vpack.c.bf16 %v401, %v400
        %v425 = vpack.c.bf16 %v403, %v402
        %v426 = vpack.c.bf16 %v405, %v404
        %v427 = vpack.c.bf16 %v407, %v406
        %v428 = vpack.c.bf16 %v409, %v408
        %v429 = vpack.c.bf16 %v411, %v410
        %v430 = vpack.c.bf16 %v413, %v412
        %v431 = vpack.c.bf16 %v415, %v414
        %vm432 = vcmask 130048
        %v434 = vsel %vm432, %v376, 0
        %v437 = vsel %vm432, %v377, 0
        %v440 = vsel %vm432, %v378, 0
        %v443 = vsel %vm432, %v379, 0
        %v446 = vsel %vm432, %v380, 0
        %v449 = vsel %vm432, %v381, 0
        %v452 = vsel %vm432, %v382, 0
        %v455 = vsel %vm432, %v383, 0
        %v458 = vsel %vm432, %v416, 0
        %v461 = vsel %vm432, %v417, 0
        %v464 = vsel %vm432, %v418, 0
        %v467 = vsel %vm432, %v419, 0
        %v470 = vsel %vm432, %v420, 0
        %v473 = vsel %vm432, %v421, 0
        %v476 = vsel %vm432, %v422, 0
        %v479 = vsel %vm432, %v423, 0
        %v482 = vsel %vm432, %v424, 0
        %v485 = vsel %vm432, %v425, 0
        %v488 = vsel %vm432, %v426, 0
        %v491 = vsel %vm432, %v427, 0
        %v494 = vsel %vm432, %v428, 0
        %v497 = vsel %vm432, %v429, 0
        %v500 = vsel %vm432, %v430, 0
        %v503 = vsel %vm432, %v431, 0
        %505 = vmatprep.subr.bf16.mxu0 0
        %506 = vmatpush1.bf16.xpose.msra.mxu0 %v479
        %507 = vmatprep.subr.bf16.mxu0 0
        %508 = vmatpush1.bf16.xpose.msra.mxu0 %v476
        %509 = vmatprep.subr.bf16.mxu0 0
        %510 = vmatpush1.bf16.xpose.msra.mxu0 %v473
        %511 = vmatprep.subr.bf16.mxu0 0
        %512 = vmatpush1.bf16.xpose.msra.mxu0 %v470
        %513 = vmatprep.subr.bf16.mxu0 0
        %514 = vmatpush1.bf16.xpose.msra.mxu0 %v467
        %515 = vmatprep.subr.bf16.mxu0 0
        %516 = vmatpush1.bf16.xpose.msra.mxu0 %v464
        %517 = vmatprep.subr.bf16.mxu0 0
        %518 = vmatpush1.bf16.xpose.msra.mxu0 %v461
        %519 = vmatprep.subr.bf16.mxu0 0
        %520 = vmatpush1.bf16.xpose.msra.mxu0 %v458
        %521 = vmatprep.subr.bf16.mxu0 0
        %522 = vmatpush2.bf16.xpose.msra.mxu0 %v503
        %523 = vmatprep.subr.bf16.mxu0 0
        %524 = vmatpush2.bf16.xpose.msra.mxu0 %v500
        %525 = vmatprep.subr.bf16.mxu0 0
        %526 = vmatpush2.bf16.xpose.msra.mxu0 %v497
        %527 = vmatprep.subr.bf16.mxu0 0
        %528 = vmatpush2.bf16.xpose.msra.mxu0 %v494
        %529 = vmatprep.subr.bf16.mxu0 0
        %530 = vmatpush2.bf16.xpose.msra.mxu0 %v491
        %531 = vmatprep.subr.bf16.mxu0 0
        %532 = vmatpush2.bf16.xpose.msra.mxu0 %v488
        %533 = vmatprep.subr.bf16.mxu0 0
        %534 = vmatpush2.bf16.xpose.msra.mxu0 %v485
        %535 = vmatprep.subr.bf16.mxu0 0
        %536 = vmatpush2.bf16.xpose.msra.mxu0 %v482
        %537 = vmatprep.mubr.bf16.mxu0 0
        %538 = vmatmul.mubr.bf16.gmra.mxu0 %v434
        %v539 = vpop.f32.mrf.mxu0
        %v540 = vadd.f32 0.0, %v539
        %v541 = vpop.f32.mrf.mxu0
        %v542 = vadd.f32 0.0, %v541
        %v543 = vpop.f32.mrf.mxu0
        %v544 = vadd.f32 0.0, %v543
        %v545 = vpop.f32.mrf.mxu0
        %v546 = vadd.f32 0.0, %v545
        %547 = vmatprep.mubr.bf16.mxu0 0
        %548 = vmatmul.mubr.bf16.gmra.mxu0 %v437
        %v549 = vpop.f32.mrf.mxu0
        %v550 = vadd.f32 0.0, %v549
        %v551 = vpop.f32.mrf.mxu0
        %v552 = vadd.f32 0.0, %v551
        %v553 = vpop.f32.mrf.mxu0
        %v554 = vadd.f32 0.0, %v553
        %v555 = vpop.f32.mrf.mxu0
        %v556 = vadd.f32 0.0, %v555
        %557 = vmatprep.mubr.bf16.mxu0 0
        %558 = vmatmul.mubr.bf16.gmra.mxu0 %v440
        %v559 = vpop.f32.mrf.mxu0
        %v560 = vadd.f32 0.0, %v559
        %v561 = vpop.f32.mrf.mxu0
        %v562 = vadd.f32 0.0, %v561
        %v563 = vpop.f32.mrf.mxu0
        %v564 = vadd.f32 0.0, %v563
        %v565 = vpop.f32.mrf.mxu0
        %v566 = vadd.f32 0.0, %v565
        %567 = vmatprep.mubr.bf16.mxu0 0
        %568 = vmatmul.mubr.bf16.gmra.mxu0 %v443
        %v569 = vpop.f32.mrf.mxu0
        %v570 = vadd.f32 0.0, %v569
        %v571 = vpop.f32.mrf.mxu0
        %v572 = vadd.f32 0.0, %v571
        %v573 = vpop.f32.mrf.mxu0
        %v574 = vadd.f32 0.0, %v573
        %v575 = vpop.f32.mrf.mxu0
        %v576 = vadd.f32 0.0, %v575
        %577 = vmatprep.mubr.bf16.mxu0 0
        %578 = vmatmul.mubr.bf16.gmra.mxu0 %v446
        %v579 = vpop.f32.mrf.mxu0
        %v580 = vadd.f32 0.0, %v579
        %v581 = vpop.f32.mrf.mxu0
        %v582 = vadd.f32 0.0, %v581
        %v583 = vpop.f32.mrf.mxu0
        %v584 = vadd.f32 0.0, %v583
        %v585 = vpop.f32.mrf.mxu0
        %v586 = vadd.f32 0.0, %v585
        %587 = vmatprep.mubr.bf16.mxu0 0
        %588 = vmatmul.mubr.bf16.gmra.mxu0 %v449
        %v589 = vpop.f32.mrf.mxu0
        %v590 = vadd.f32 0.0, %v589
        %v591 = vpop.f32.mrf.mxu0
        %v592 = vadd.f32 0.0, %v591
        %v593 = vpop.f32.mrf.mxu0
        %v594 = vadd.f32 0.0, %v593
        %v595 = vpop.f32.mrf.mxu0
        %v596 = vadd.f32 0.0, %v595
        %597 = vmatprep.mubr.bf16.mxu0 0
        %598 = vmatmul.mubr.bf16.gmra.mxu0 %v452
        %v599 = vpop.f32.mrf.mxu0
        %v600 = vadd.f32 0.0, %v599
        %v601 = vpop.f32.mrf.mxu0
        %v602 = vadd.f32 0.0, %v601
        %v603 = vpop.f32.mrf.mxu0
        %v604 = vadd.f32 0.0, %v603
        %v605 = vpop.f32.mrf.mxu0
        %v606 = vadd.f32 0.0, %v605
        %607 = vmatprep.mubr.bf16.mxu0 0
        %608 = vmatmul.mubr.bf16.gmra.mxu0 %v455
        %v609 = vpop.f32.mrf.mxu0
        %v610 = vadd.f32 0.0, %v609
        %v611 = vpop.f32.mrf.mxu0
        %v612 = vadd.f32 0.0, %v611
        %v613 = vpop.f32.mrf.mxu0
        %v614 = vadd.f32 0.0, %v613
        %v615 = vpop.f32.mrf.mxu0
        %v616 = vadd.f32 0.0, %v615
        %617 = vdwg.mxu0
        %v618 = vmul.f32 %v328, %v540
        %v619 = vmul.f32 %v329, %v542
        %v620 = vmul.f32 %v330, %v544
        %v621 = vmul.f32 %v331, %v546
        %v622 = vmul.f32 %v332, %v550
        %v623 = vmul.f32 %v333, %v552
        %v624 = vmul.f32 %v334, %v554
        %v625 = vmul.f32 %v335, %v556
        %v626 = vmul.f32 %v336, %v560
        %v627 = vmul.f32 %v337, %v562
        %v628 = vmul.f32 %v338, %v564
        %v629 = vmul.f32 %v339, %v566
        %v630 = vmul.f32 %v340, %v570
        %v631 = vmul.f32 %v341, %v572
        %v632 = vmul.f32 %v342, %v574
        %v633 = vmul.f32 %v343, %v576
        %v634 = vmul.f32 %v344, %v580
        %v635 = vmul.f32 %v345, %v582
        %v636 = vmul.f32 %v346, %v584
        %v637 = vmul.f32 %v347, %v586
        %v638 = vmul.f32 %v348, %v590
        %v639 = vmul.f32 %v349, %v592
        %v640 = vmul.f32 %v350, %v594
        %v641 = vmul.f32 %v351, %v596
        %v642 = vmul.f32 %v352, %v600
        %v643 = vmul.f32 %v353, %v602
        %v644 = vmul.f32 %v354, %v604
        %v645 = vmul.f32 %v355, %v606
        %v646 = vmul.f32 %v356, %v610
        %v647 = vmul.f32 %v357, %v612
        %v648 = vmul.f32 %v358, %v614
        %v649 = vmul.f32 %v359, %v616
        %v650 = vsub.f32 1.0, %v540
        %v651 = vsub.f32 1.0, %v542
        %v652 = vsub.f32 1.0, %v544
        %v653 = vsub.f32 1.0, %v546
        %v654 = vsub.f32 1.0, %v550
        %v655 = vsub.f32 1.0, %v552
        %v656 = vsub.f32 1.0, %v554
        %v657 = vsub.f32 1.0, %v556
        %v658 = vsub.f32 1.0, %v560
        %v659 = vsub.f32 1.0, %v562
        %v660 = vsub.f32 1.0, %v564
        %v661 = vsub.f32 1.0, %v566
        %v662 = vsub.f32 1.0, %v570
        %v663 = vsub.f32 1.0, %v572
        %v664 = vsub.f32 1.0, %v574
        %v665 = vsub.f32 1.0, %v576
        %v666 = vsub.f32 1.0, %v580
        %v667 = vsub.f32 1.0, %v582
        %v668 = vsub.f32 1.0, %v584
        %v669 = vsub.f32 1.0, %v586
        %v670 = vsub.f32 1.0, %v590
        %v671 = vsub.f32 1.0, %v592
        %v672 = vsub.f32 1.0, %v594
        %v673 = vsub.f32 1.0, %v596
        %v674 = vsub.f32 1.0, %v600
        %v675 = vsub.f32 1.0, %v602
        %v676 = vsub.f32 1.0, %v604
        %v677 = vsub.f32 1.0, %v606
        %v678 = vsub.f32 1.0, %v610
        %v679 = vsub.f32 1.0, %v612
        %v680 = vsub.f32 1.0, %v614
        %v681 = vsub.f32 1.0, %v616
        %v682 = vmax.f32 %v328, 0.0
        %v683 = vmax.f32 %v329, 0.0
        %v684 = vmax.f32 %v330, 0.0
        %v685 = vmax.f32 %v331, 0.0
        %v686 = vmax.f32 %v332, 0.0
        %v687 = vmax.f32 %v333, 0.0
        %v688 = vmax.f32 %v334, 0.0
        %v689 = vmax.f32 %v335, 0.0
        %v690 = vmax.f32 %v336, 0.0
        %v691 = vmax.f32 %v337, 0.0
        %v692 = vmax.f32 %v338, 0.0
        %v693 = vmax.f32 %v339, 0.0
        %v694 = vmax.f32 %v340, 0.0
        %v695 = vmax.f32 %v341, 0.0
        %v696 = vmax.f32 %v342, 0.0
        %v697 = vmax.f32 %v343, 0.0
        %v698 = vmax.f32 %v344, 0.0
        %v699 = vmax.f32 %v345, 0.0
        %v700 = vmax.f32 %v346, 0.0
        %v701 = vmax.f32 %v347, 0.0
        %v702 = vmax.f32 %v348, 0.0
        %v703 = vmax.f32 %v349, 0.0
        %v704 = vmax.f32 %v350, 0.0
        %v705 = vmax.f32 %v351, 0.0
        %v706 = vmax.f32 %v352, 0.0
        %v707 = vmax.f32 %v353, 0.0
        %v708 = vmax.f32 %v354, 0.0
        %v709 = vmax.f32 %v355, 0.0
        %v710 = vmax.f32 %v356, 0.0
        %v711 = vmax.f32 %v357, 0.0
        %v712 = vmax.f32 %v358, 0.0
        %v713 = vmax.f32 %v359, 0.0
        %v714 = vsub.f32 %v682, %v618
        %v715 = vsub.f32 %v683, %v619
        %v716 = vsub.f32 %v684, %v620
        %v717 = vsub.f32 %v685, %v621
        %v718 = vsub.f32 %v686, %v622
        %v719 = vsub.f32 %v687, %v623
        %v720 = vsub.f32 %v688, %v624
        %v721 = vsub.f32 %v689, %v625
        %v722 = vsub.f32 %v690, %v626
        %v723 = vsub.f32 %v691, %v627
        %v724 = vsub.f32 %v692, %v628
        %v725 = vsub.f32 %v693, %v629
        %v726 = vsub.f32 %v694, %v630
        %v727 = vsub.f32 %v695, %v631
        %v728 = vsub.f32 %v696, %v632
        %v729 = vsub.f32 %v697, %v633
        %v730 = vsub.f32 %v698, %v634
        %v731 = vsub.f32 %v699, %v635
        %v732 = vsub.f32 %v700, %v636
        %v733 = vsub.f32 %v701, %v637
        %v734 = vsub.f32 %v702, %v638
        %v735 = vsub.f32 %v703, %v639
        %v736 = vsub.f32 %v704, %v640
        %v737 = vsub.f32 %v705, %v641
        %v738 = vsub.f32 %v706, %v642
        %v739 = vsub.f32 %v707, %v643
        %v740 = vsub.f32 %v708, %v644
        %v741 = vsub.f32 %v709, %v645
        %v742 = vsub.f32 %v710, %v646
        %v743 = vsub.f32 %v711, %v647
        %v744 = vsub.f32 %v712, %v648
        %v745 = vsub.f32 %v713, %v649
        %v746 = vand.u32 2147483647, %v328
        %v747 = vand.u32 2147483647, %v329
        %v748 = vand.u32 2147483647, %v330
        %v749 = vand.u32 2147483647, %v331
        %v750 = vand.u32 2147483647, %v332
        %v751 = vand.u32 2147483647, %v333
        %v752 = vand.u32 2147483647, %v334
        %v753 = vand.u32 2147483647, %v335
        %v754 = vand.u32 2147483647, %v336
        %v755 = vand.u32 2147483647, %v337
        %v756 = vand.u32 2147483647, %v338
        %v757 = vand.u32 2147483647, %v339
        %v758 = vand.u32 2147483647, %v340
        %v759 = vand.u32 2147483647, %v341
        %v760 = vand.u32 2147483647, %v342
        %v761 = vand.u32 2147483647, %v343
        %v762 = vand.u32 2147483647, %v344
        %v763 = vand.u32 2147483647, %v345
        %v764 = vand.u32 2147483647, %v346
        %v765 = vand.u32 2147483647, %v347
        %v766 = vand.u32 2147483647, %v348
        %v767 = vand.u32 2147483647, %v349
        %v768 = vand.u32 2147483647, %v350
        %v769 = vand.u32 2147483647, %v351
        %v770 = vand.u32 2147483647, %v352
        %v771 = vand.u32 2147483647, %v353
        %v772 = vand.u32 2147483647, %v354
        %v773 = vand.u32 2147483647, %v355
        %v774 = vand.u32 2147483647, %v356
        %v775 = vand.u32 2147483647, %v357
        %v776 = vand.u32 2147483647, %v358
        %v777 = vand.u32 2147483647, %v359
        %v778 = vsub.f32 0.0, %v746
        %v779 = vsub.f32 0.0, %v747
        %v780 = vsub.f32 0.0, %v748
        %v781 = vsub.f32 0.0, %v749
        %v782 = vsub.f32 0.0, %v750
        %v783 = vsub.f32 0.0, %v751
        %v784 = vsub.f32 0.0, %v752
        %v785 = vsub.f32 0.0, %v753
        %v786 = vsub.f32 0.0, %v754
        %v787 = vsub.f32 0.0, %v755
        %v788 = vsub.f32 0.0, %v756
        %v789 = vsub.f32 0.0, %v757
        %v790 = vsub.f32 0.0, %v758
        %v791 = vsub.f32 0.0, %v759
        %v792 = vsub.f32 0.0, %v760
        %v793 = vsub.f32 0.0, %v761
        %v794 = vsub.f32 0.0, %v762
        %v795 = vsub.f32 0.0, %v763
        %v796 = vsub.f32 0.0, %v764
        %v797 = vsub.f32 0.0, %v765
        %v798 = vsub.f32 0.0, %v766
        %v799 = vsub.f32 0.0, %v767
        %v800 = vsub.f32 0.0, %v768
        %v801 = vsub.f32 0.0, %v769
        %v802 = vsub.f32 0.0, %v770
        %v803 = vsub.f32 0.0, %v771
        %v804 = vsub.f32 0.0, %v772
        %v805 = vsub.f32 0.0, %v773
        %v806 = vsub.f32 0.0, %v774
        %v807 = vsub.f32 0.0, %v775
        %v808 = vsub.f32 0.0, %v776
        %v809 = vsub.f32 0.0, %v777
        %v810 = vmul.f32 %v778, 1.442695
        %v811 = vpow.pop %v810
        %v812 = vmul.f32 %v779, 1.442695
        %v813 = vpow.pop %v812
        %v814 = vmul.f32 %v780, 1.442695
        %v815 = vpow.pop %v814
        %v816 = vmul.f32 %v781, 1.442695
        %v817 = vpow.pop %v816
        %v818 = vmul.f32 %v782, 1.442695
        %v819 = vpow.pop %v818
        %v820 = vmul.f32 %v783, 1.442695
        %v821 = vpow.pop %v820
        %v822 = vmul.f32 %v784, 1.442695
        %v823 = vpow.pop %v822
        %v824 = vmul.f32 %v785, 1.442695
        %v825 = vpow.pop %v824
        %v826 = vmul.f32 %v786, 1.442695
        %v827 = vpow.pop %v826
        %v828 = vmul.f32 %v787, 1.442695
        %v829 = vpow.pop %v828
        %v830 = vmul.f32 %v788, 1.442695
        %v831 = vpow.pop %v830
        %v832 = vmul.f32 %v789, 1.442695
        %v833 = vpow.pop %v832
        %v834 = vmul.f32 %v790, 1.442695
        %v835 = vpow.pop %v834
        %v836 = vmul.f32 %v791, 1.442695
        %v837 = vpow.pop %v836
        %v838 = vmul.f32 %v792, 1.442695
        %v839 = vpow.pop %v838
        %v840 = vmul.f32 %v793, 1.442695
        %v841 = vpow.pop %v840
        %v842 = vmul.f32 %v794, 1.442695
        %v843 = vpow.pop %v842
        %v844 = vmul.f32 %v795, 1.442695
        %v845 = vpow.pop %v844
        %v846 = vmul.f32 %v796, 1.442695
        %v847 = vpow.pop %v846
        %v848 = vmul.f32 %v797, 1.442695
        %v849 = vpow.pop %v848
        %v850 = vmul.f32 %v798, 1.442695
        %v851 = vpow.pop %v850
        %v852 = vmul.f32 %v799, 1.442695
        %v853 = vpow.pop %v852
        %v854 = vmul.f32 %v800, 1.442695
        %v855 = vpow.pop %v854
        %v856 = vmul.f32 %v801, 1.442695
        %v857 = vpow.pop %v856
        %v858 = vmul.f32 %v802, 1.442695
        %v859 = vpow.pop %v858
        %v860 = vmul.f32 %v803, 1.442695
        %v861 = vpow.pop %v860
        %v862 = vmul.f32 %v804, 1.442695
        %v863 = vpow.pop %v862
        %v864 = vmul.f32 %v805, 1.442695
        %v865 = vpow.pop %v864
        %v866 = vmul.f32 %v806, 1.442695
        %v867 = vpow.pop %v866
        %v868 = vmul.f32 %v807, 1.442695
        %v869 = vpow.pop %v868
        %v870 = vmul.f32 %v808, 1.442695
        %v871 = vpow.pop %v870
        %v872 = vmul.f32 %v809, 1.442695
        %v873 = vpow.pop %v872
        %v874 = vadd.f32 %v811, 1.0
        %v875 = vlog2.pop %v874
        %v876 = vmul.f32 %v875, 0.6931472
        %v877 = vmul.f32 -0.5, %v811
        %v878 = vadd.f32 %v877, 1.0
        %v879 = vmul.f32 %v878, %v811
        %v880 = vand.u32 2147483647, %v811
        %vm881 = vcmp.lt.f32.partialorder %v880, 0.0004427343
        %v882 = vsel %vm881, %v879, %v876
        %v883 = vadd.f32 %v813, 1.0
        %v884 = vlog2.pop %v883
        %v885 = vmul.f32 %v884, 0.6931472
        %v886 = vmul.f32 -0.5, %v813
        %v887 = vadd.f32 %v886, 1.0
        %v888 = vmul.f32 %v887, %v813
        %v889 = vand.u32 2147483647, %v813
        %vm890 = vcmp.lt.f32.partialorder %v889, 0.0004427343
        %v891 = vsel %vm890, %v888, %v885
        %v892 = vadd.f32 %v815, 1.0
        %v893 = vlog2.pop %v892
        %v894 = vmul.f32 %v893, 0.6931472
        %v895 = vmul.f32 -0.5, %v815
        %v896 = vadd.f32 %v895, 1.0
        %v897 = vmul.f32 %v896, %v815
        %v898 = vand.u32 2147483647, %v815
        %vm899 = vcmp.lt.f32.partialorder %v898, 0.0004427343
        %v900 = vsel %vm899, %v897, %v894
        %v901 = vadd.f32 %v817, 1.0
        %v902 = vlog2.pop %v901
        %v903 = vmul.f32 %v902, 0.6931472
        %v904 = vmul.f32 -0.5, %v817
        %v905 = vadd.f32 %v904, 1.0
        %v906 = vmul.f32 %v905, %v817
        %v907 = vand.u32 2147483647, %v817
        %vm908 = vcmp.lt.f32.partialorder %v907, 0.0004427343
        %v909 = vsel %vm908, %v906, %v903
        %v910 = vadd.f32 %v819, 1.0
        %v911 = vlog2.pop %v910
        %v912 = vmul.f32 %v911, 0.6931472
        %v913 = vmul.f32 -0.5, %v819
        %v914 = vadd.f32 %v913, 1.0
        %v915 = vmul.f32 %v914, %v819
        %v916 = vand.u32 2147483647, %v819
        %vm917 = vcmp.lt.f32.partialorder %v916, 0.0004427343
        %v918 = vsel %vm917, %v915, %v912
        %v919 = vadd.f32 %v821, 1.0
        %v920 = vlog2.pop %v919
        %v921 = vmul.f32 %v920, 0.6931472
        %v922 = vmul.f32 -0.5, %v821
        %v923 = vadd.f32 %v922, 1.0
        %v924 = vmul.f32 %v923, %v821
        %v925 = vand.u32 2147483647, %v821
        %vm926 = vcmp.lt.f32.partialorder %v925, 0.0004427343
        %v927 = vsel %vm926, %v924, %v921
        %v928 = vadd.f32 %v823, 1.0
        %v929 = vlog2.pop %v928
        %v930 = vmul.f32 %v929, 0.6931472
        %v931 = vmul.f32 -0.5, %v823
        %v932 = vadd.f32 %v931, 1.0
        %v933 = vmul.f32 %v932, %v823
        %v934 = vand.u32 2147483647, %v823
        %vm935 = vcmp.lt.f32.partialorder %v934, 0.0004427343
        %v936 = vsel %vm935, %v933, %v930
        %v937 = vadd.f32 %v825, 1.0
        %v938 = vlog2.pop %v937
        %v939 = vmul.f32 %v938, 0.6931472
        %v940 = vmul.f32 -0.5, %v825
        %v941 = vadd.f32 %v940, 1.0
        %v942 = vmul.f32 %v941, %v825
        %v943 = vand.u32 2147483647, %v825
        %vm944 = vcmp.lt.f32.partialorder %v943, 0.0004427343
        %v945 = vsel %vm944, %v942, %v939
        %v946 = vadd.f32 %v827, 1.0
        %v947 = vlog2.pop %v946
        %v948 = vmul.f32 %v947, 0.6931472
        %v949 = vmul.f32 -0.5, %v827
        %v950 = vadd.f32 %v949, 1.0
        %v951 = vmul.f32 %v950, %v827
        %v952 = vand.u32 2147483647, %v827
        %vm953 = vcmp.lt.f32.partialorder %v952, 0.0004427343
        %v954 = vsel %vm953, %v951, %v948
        %v955 = vadd.f32 %v829, 1.0
        %v956 = vlog2.pop %v955
        %v957 = vmul.f32 %v956, 0.6931472
        %v958 = vmul.f32 -0.5, %v829
        %v959 = vadd.f32 %v958, 1.0
        %v960 = vmul.f32 %v959, %v829
        %v961 = vand.u32 2147483647, %v829
        %vm962 = vcmp.lt.f32.partialorder %v961, 0.0004427343
        %v963 = vsel %vm962, %v960, %v957
        %v964 = vadd.f32 %v831, 1.0
        %v965 = vlog2.pop %v964
        %v966 = vmul.f32 %v965, 0.6931472
        %v967 = vmul.f32 -0.5, %v831
        %v968 = vadd.f32 %v967, 1.0
        %v969 = vmul.f32 %v968, %v831
        %v970 = vand.u32 2147483647, %v831
        %vm971 = vcmp.lt.f32.partialorder %v970, 0.0004427343
        %v972 = vsel %vm971, %v969, %v966
        %v973 = vadd.f32 %v833, 1.0
        %v974 = vlog2.pop %v973
        %v975 = vmul.f32 %v974, 0.6931472
        %v976 = vmul.f32 -0.5, %v833
        %v977 = vadd.f32 %v976, 1.0
        %v978 = vmul.f32 %v977, %v833
        %v979 = vand.u32 2147483647, %v833
        %vm980 = vcmp.lt.f32.partialorder %v979, 0.0004427343
        %v981 = vsel %vm980, %v978, %v975
        %v982 = vadd.f32 %v835, 1.0
        %v983 = vlog2.pop %v982
        %v984 = vmul.f32 %v983, 0.6931472
        %v985 = vmul.f32 -0.5, %v835
        %v986 = vadd.f32 %v985, 1.0
        %v987 = vmul.f32 %v986, %v835
        %v988 = vand.u32 2147483647, %v835
        %vm989 = vcmp.lt.f32.partialorder %v988, 0.0004427343
        %v990 = vsel %vm989, %v987, %v984
        %v991 = vadd.f32 %v837, 1.0
        %v992 = vlog2.pop %v991
        %v993 = vmul.f32 %v992, 0.6931472
        %v994 = vmul.f32 -0.5, %v837
        %v995 = vadd.f32 %v994, 1.0
        %v996 = vmul.f32 %v995, %v837
        %v997 = vand.u32 2147483647, %v837
        %vm998 = vcmp.lt.f32.partialorder %v997, 0.0004427343
        %v999 = vsel %vm998, %v996, %v993
        %v1000 = vadd.f32 %v839, 1.0
        %v1001 = vlog2.pop %v1000
        %v1002 = vmul.f32 %v1001, 0.6931472
        %v1003 = vmul.f32 -0.5, %v839
        %v1004 = vadd.f32 %v1003, 1.0
        %v1005 = vmul.f32 %v1004, %v839
        %v1006 = vand.u32 2147483647, %v839
        %vm1007 = vcmp.lt.f32.partialorder %v1006, 0.0004427343
        %v1008 = vsel %vm1007, %v1005, %v1002
        %v1009 = vadd.f32 %v841, 1.0
        %v1010 = vlog2.pop %v1009
        %v1011 = vmul.f32 %v1010, 0.6931472
        %v1012 = vmul.f32 -0.5, %v841
        %v1013 = vadd.f32 %v1012, 1.0
        %v1014 = vmul.f32 %v1013, %v841
        %v1015 = vand.u32 2147483647, %v841
        %vm1016 = vcmp.lt.f32.partialorder %v1015, 0.0004427343
        %v1017 = vsel %vm1016, %v1014, %v1011
        %v1018 = vadd.f32 %v843, 1.0
        %v1019 = vlog2.pop %v1018
        %v1020 = vmul.f32 %v1019, 0.6931472
        %v1021 = vmul.f32 -0.5, %v843
        %v1022 = vadd.f32 %v1021, 1.0
        %v1023 = vmul.f32 %v1022, %v843
        %v1024 = vand.u32 2147483647, %v843
        %vm1025 = vcmp.lt.f32.partialorder %v1024, 0.0004427343
        %v1026 = vsel %vm1025, %v1023, %v1020
        %v1027 = vadd.f32 %v845, 1.0
        %v1028 = vlog2.pop %v1027
        %v1029 = vmul.f32 %v1028, 0.6931472
        %v1030 = vmul.f32 -0.5, %v845
        %v1031 = vadd.f32 %v1030, 1.0
        %v1032 = vmul.f32 %v1031, %v845
        %v1033 = vand.u32 2147483647, %v845
        %vm1034 = vcmp.lt.f32.partialorder %v1033, 0.0004427343
        %v1035 = vsel %vm1034, %v1032, %v1029
        %v1036 = vadd.f32 %v847, 1.0
        %v1037 = vlog2.pop %v1036
        %v1038 = vmul.f32 %v1037, 0.6931472
        %v1039 = vmul.f32 -0.5, %v847
        %v1040 = vadd.f32 %v1039, 1.0
        %v1041 = vmul.f32 %v1040, %v847
        %v1042 = vand.u32 2147483647, %v847
        %vm1043 = vcmp.lt.f32.partialorder %v1042, 0.0004427343
        %v1044 = vsel %vm1043, %v1041, %v1038
        %v1045 = vadd.f32 %v849, 1.0
        %v1046 = vlog2.pop %v1045
        %v1047 = vmul.f32 %v1046, 0.6931472
        %v1048 = vmul.f32 -0.5, %v849
        %v1049 = vadd.f32 %v1048, 1.0
        %v1050 = vmul.f32 %v1049, %v849
        %v1051 = vand.u32 2147483647, %v849
        %vm1052 = vcmp.lt.f32.partialorder %v1051, 0.0004427343
        %v1053 = vsel %vm1052, %v1050, %v1047
        %v1054 = vadd.f32 %v851, 1.0
        %v1055 = vlog2.pop %v1054
        %v1056 = vmul.f32 %v1055, 0.6931472
        %v1057 = vmul.f32 -0.5, %v851
        %v1058 = vadd.f32 %v1057, 1.0
        %v1059 = vmul.f32 %v1058, %v851
        %v1060 = vand.u32 2147483647, %v851
        %vm1061 = vcmp.lt.f32.partialorder %v1060, 0.0004427343
        %v1062 = vsel %vm1061, %v1059, %v1056
        %v1063 = vadd.f32 %v853, 1.0
        %v1064 = vlog2.pop %v1063
        %v1065 = vmul.f32 %v1064, 0.6931472
        %v1066 = vmul.f32 -0.5, %v853
        %v1067 = vadd.f32 %v1066, 1.0
        %v1068 = vmul.f32 %v1067, %v853
        %v1069 = vand.u32 2147483647, %v853
        %vm1070 = vcmp.lt.f32.partialorder %v1069, 0.0004427343
        %v1071 = vsel %vm1070, %v1068, %v1065
        %v1072 = vadd.f32 %v855, 1.0
        %v1073 = vlog2.pop %v1072
        %v1074 = vmul.f32 %v1073, 0.6931472
        %v1075 = vmul.f32 -0.5, %v855
        %v1076 = vadd.f32 %v1075, 1.0
        %v1077 = vmul.f32 %v1076, %v855
        %v1078 = vand.u32 2147483647, %v855
        %vm1079 = vcmp.lt.f32.partialorder %v1078, 0.0004427343
        %v1080 = vsel %vm1079, %v1077, %v1074
        %v1081 = vadd.f32 %v857, 1.0
        %v1082 = vlog2.pop %v1081
        %v1083 = vmul.f32 %v1082, 0.6931472
        %v1084 = vmul.f32 -0.5, %v857
        %v1085 = vadd.f32 %v1084, 1.0
        %v1086 = vmul.f32 %v1085, %v857
        %v1087 = vand.u32 2147483647, %v857
        %vm1088 = vcmp.lt.f32.partialorder %v1087, 0.0004427343
        %v1089 = vsel %vm1088, %v1086, %v1083
        %v1090 = vadd.f32 %v859, 1.0
        %v1091 = vlog2.pop %v1090
        %v1092 = vmul.f32 %v1091, 0.6931472
        %v1093 = vmul.f32 -0.5, %v859
        %v1094 = vadd.f32 %v1093, 1.0
        %v1095 = vmul.f32 %v1094, %v859
        %v1096 = vand.u32 2147483647, %v859
        %vm1097 = vcmp.lt.f32.partialorder %v1096, 0.0004427343
        %v1098 = vsel %vm1097, %v1095, %v1092
        %v1099 = vadd.f32 %v861, 1.0
        %v1100 = vlog2.pop %v1099
        %v1101 = vmul.f32 %v1100, 0.6931472
        %v1102 = vmul.f32 -0.5, %v861
        %v1103 = vadd.f32 %v1102, 1.0
        %v1104 = vmul.f32 %v1103, %v861
        %v1105 = vand.u32 2147483647, %v861
        %vm1106 = vcmp.lt.f32.partialorder %v1105, 0.0004427343
        %v1107 = vsel %vm1106, %v1104, %v1101
        %v1108 = vadd.f32 %v863, 1.0
        %v1109 = vlog2.pop %v1108
        %v1110 = vmul.f32 %v1109, 0.6931472
        %v1111 = vmul.f32 -0.5, %v863
        %v1112 = vadd.f32 %v1111, 1.0
        %v1113 = vmul.f32 %v1112, %v863
        %v1114 = vand.u32 2147483647, %v863
        %vm1115 = vcmp.lt.f32.partialorder %v1114, 0.0004427343
        %v1116 = vsel %vm1115, %v1113, %v1110
        %v1117 = vadd.f32 %v865, 1.0
        %v1118 = vlog2.pop %v1117
        %v1119 = vmul.f32 %v1118, 0.6931472
        %v1120 = vmul.f32 -0.5, %v865
        %v1121 = vadd.f32 %v1120, 1.0
        %v1122 = vmul.f32 %v1121, %v865
        %v1123 = vand.u32 2147483647, %v865
        %vm1124 = vcmp.lt.f32.partialorder %v1123, 0.0004427343
        %v1125 = vsel %vm1124, %v1122, %v1119
        %v1126 = vadd.f32 %v867, 1.0
        %v1127 = vlog2.pop %v1126
        %v1128 = vmul.f32 %v1127, 0.6931472
        %v1129 = vmul.f32 -0.5, %v867
        %v1130 = vadd.f32 %v1129, 1.0
        %v1131 = vmul.f32 %v1130, %v867
        %v1132 = vand.u32 2147483647, %v867
        %vm1133 = vcmp.lt.f32.partialorder %v1132, 0.0004427343
        %v1134 = vsel %vm1133, %v1131, %v1128
        %v1135 = vadd.f32 %v869, 1.0
        %v1136 = vlog2.pop %v1135
        %v1137 = vmul.f32 %v1136, 0.6931472
        %v1138 = vmul.f32 -0.5, %v869
        %v1139 = vadd.f32 %v1138, 1.0
        %v1140 = vmul.f32 %v1139, %v869
        %v1141 = vand.u32 2147483647, %v869
        %vm1142 = vcmp.lt.f32.partialorder %v1141, 0.0004427343
        %v1143 = vsel %vm1142, %v1140, %v1137
        %v1144 = vadd.f32 %v871, 1.0
        %v1145 = vlog2.pop %v1144
        %v1146 = vmul.f32 %v1145, 0.6931472
        %v1147 = vmul.f32 -0.5, %v871
        %v1148 = vadd.f32 %v1147, 1.0
        %v1149 = vmul.f32 %v1148, %v871
        %v1150 = vand.u32 2147483647, %v871
        %vm1151 = vcmp.lt.f32.partialorder %v1150, 0.0004427343
        %v1152 = vsel %vm1151, %v1149, %v1146
        %v1153 = vadd.f32 %v873, 1.0
        %v1154 = vlog2.pop %v1153
        %v1155 = vmul.f32 %v1154, 0.6931472
        %v1156 = vmul.f32 -0.5, %v873
        %v1157 = vadd.f32 %v1156, 1.0
        %v1158 = vmul.f32 %v1157, %v873
        %v1159 = vand.u32 2147483647, %v873
        %vm1160 = vcmp.lt.f32.partialorder %v1159, 0.0004427343
        %v1161 = vsel %vm1160, %v1158, %v1155
        %v1162 = vadd.f32 %v714, %v882
        %v1163 = vadd.f32 %v715, %v891
        %v1164 = vadd.f32 %v716, %v900
        %v1165 = vadd.f32 %v717, %v909
        %v1166 = vadd.f32 %v718, %v918
        %v1167 = vadd.f32 %v719, %v927
        %v1168 = vadd.f32 %v720, %v936
        %v1169 = vadd.f32 %v721, %v945
        %v1170 = vadd.f32 %v722, %v954
        %v1171 = vadd.f32 %v723, %v963
        %v1172 = vadd.f32 %v724, %v972
        %v1173 = vadd.f32 %v725, %v981
        %v1174 = vadd.f32 %v726, %v990
        %v1175 = vadd.f32 %v727, %v999
        %v1176 = vadd.f32 %v728, %v1008
        %v1177 = vadd.f32 %v729, %v1017
        %v1178 = vadd.f32 %v730, %v1026
        %v1179 = vadd.f32 %v731, %v1035
        %v1180 = vadd.f32 %v732, %v1044
        %v1181 = vadd.f32 %v733, %v1053
        %v1182 = vadd.f32 %v734, %v1062
        %v1183 = vadd.f32 %v735, %v1071
        %v1184 = vadd.f32 %v736, %v1080
        %v1185 = vadd.f32 %v737, %v1089
        %v1186 = vadd.f32 %v738, %v1098
        %v1187 = vadd.f32 %v739, %v1107
        %v1188 = vadd.f32 %v740, %v1116
        %v1189 = vadd.f32 %v741, %v1125
        %v1190 = vadd.f32 %v742, %v1134
        %v1191 = vadd.f32 %v743, %v1143
        %v1192 = vadd.f32 %v744, %v1152
        %v1193 = vadd.f32 %v745, %v1161
        %v1194 = vadd.f32 %v1162, %v1163
        %1195 = vadd.xlane.f32.xlu0 %v1194
        %v1196 = vpop.xlane.xlu0 %1195
        %v1197 = vadd.f32 %v1164, %v1165
        %1198 = vadd.xlane.f32.xlu0 %v1197
        %v1199 = vpop.xlane.xlu0 %1198
        %v1200 = vadd.f32 %v1166, %v1167
        %1201 = vadd.xlane.f32.xlu0 %v1200
        %v1202 = vpop.xlane.xlu0 %1201
        %v1203 = vadd.f32 %v1168, %v1169
        %1204 = vadd.xlane.f32.xlu0 %v1203
        %v1205 = vpop.xlane.xlu0 %1204
        %v1206 = vadd.f32 %v1170, %v1171
        %1207 = vadd.xlane.f32.xlu0 %v1206
        %v1208 = vpop.xlane.xlu0 %1207
        %v1209 = vadd.f32 %v1172, %v1173
        %1210 = vadd.xlane.f32.xlu0 %v1209
        %v1211 = vpop.xlane.xlu0 %1210
        %v1212 = vadd.f32 %v1174, %v1175
        %1213 = vadd.xlane.f32.xlu0 %v1212
        %v1214 = vpop.xlane.xlu0 %1213
        %v1215 = vadd.f32 %v1176, %v1177
        %1216 = vadd.xlane.f32.xlu0 %v1215
        %v1217 = vpop.xlane.xlu0 %1216
        %v1218 = vadd.f32 %v1178, %v1179
        %1219 = vadd.xlane.f32.xlu0 %v1218
        %v1220 = vpop.xlane.xlu0 %1219
        %v1221 = vadd.f32 %v1180, %v1181
        %1222 = vadd.xlane.f32.xlu0 %v1221
        %v1223 = vpop.xlane.xlu0 %1222
        %v1224 = vadd.f32 %v1182, %v1183
        %1225 = vadd.xlane.f32.xlu0 %v1224
        %v1226 = vpop.xlane.xlu0 %1225
        %v1227 = vadd.f32 %v1184, %v1185
        %1228 = vadd.xlane.f32.xlu0 %v1227
        %v1229 = vpop.xlane.xlu0 %1228
        %v1230 = vadd.f32 %v1186, %v1187
        %1231 = vadd.xlane.f32.xlu0 %v1230
        %v1232 = vpop.xlane.xlu0 %1231
        %v1233 = vadd.f32 %v1188, %v1189
        %1234 = vadd.xlane.f32.xlu0 %v1233
        %v1235 = vpop.xlane.xlu0 %1234
        %v1236 = vadd.f32 %v1190, %v1191
        %1237 = vadd.xlane.f32.xlu0 %v1236
        %v1238 = vpop.xlane.xlu0 %1237
        %v1239 = vadd.f32 %v1192, %v1193
        %1240 = vadd.xlane.f32.xlu0 %v1239
        %v1241 = vpop.xlane.xlu0 %1240
        %vm1242 = vcmask 7168
        %1243 = vst.msk [vmem:[%s315] sm:$0xff] %vm1242, %v1196
        %1244 = vst.msk [vmem:[%s315 + $0x8] sm:$0xff] %vm1242, %v1199
        %1245 = vst.msk [vmem:[%s315 + $0x10] sm:$0xff] %vm1242, %v1202
        %1246 = vst.msk [vmem:[%s315 + $0x18] sm:$0xff] %vm1242, %v1205
        %1247 = vst.msk [vmem:[%s315 + $0x20] sm:$0xff] %vm1242, %v1208
        %1248 = vst.msk [vmem:[%s315 + $0x28] sm:$0xff] %vm1242, %v1211
        %1249 = vst.msk [vmem:[%s315 + $0x30] sm:$0xff] %vm1242, %v1214
        %1250 = vst.msk [vmem:[%s315 + $0x38] sm:$0xff] %vm1242, %v1217
        %1251 = vst.msk [vmem:[%s315 + $0x40] sm:$0xff] %vm1242, %v1220
        %1252 = vst.msk [vmem:[%s315 + $0x48] sm:$0xff] %vm1242, %v1223
        %1253 = vst.msk [vmem:[%s315 + $0x50] sm:$0xff] %vm1242, %v1226
        %1254 = vst.msk [vmem:[%s315 + $0x58] sm:$0xff] %vm1242, %v1229
        %1255 = vst.msk [vmem:[%s315 + $0x60] sm:$0xff] %vm1242, %v1232
        %1256 = vst.msk [vmem:[%s315 + $0x68] sm:$0xff] %vm1242, %v1235
        %1257 = vst.msk [vmem:[%s315 + $0x70] sm:$0xff] %vm1242, %v1238
        %1258 = vst.msk [vmem:[%s315 + $0x78] sm:$0xff] %vm1242, %v1241
        %v1259 = vadd.f32 %v618, %v619
        %1260 = vadd.xlane.f32.xlu0 %v1259
        %v1261 = vpop.xlane.xlu0 %1260
        %v1262 = vadd.f32 %v620, %v621
        %1263 = vadd.xlane.f32.xlu0 %v1262
        %v1264 = vpop.xlane.xlu0 %1263
        %v1265 = vadd.f32 %v622, %v623
        %1266 = vadd.xlane.f32.xlu0 %v1265
        %v1267 = vpop.xlane.xlu0 %1266
        %v1268 = vadd.f32 %v624, %v625
        %1269 = vadd.xlane.f32.xlu0 %v1268
        %v1270 = vpop.xlane.xlu0 %1269
        %v1271 = vadd.f32 %v626, %v627
        %1272 = vadd.xlane.f32.xlu0 %v1271
        %v1273 = vpop.xlane.xlu0 %1272
        %v1274 = vadd.f32 %v628, %v629
        %1275 = vadd.xlane.f32.xlu0 %v1274
        %v1276 = vpop.xlane.xlu0 %1275
        %v1277 = vadd.f32 %v630, %v631
        %1278 = vadd.xlane.f32.xlu0 %v1277
        %v1279 = vpop.xlane.xlu0 %1278
        %v1280 = vadd.f32 %v632, %v633
        %1281 = vadd.xlane.f32.xlu0 %v1280
        %v1282 = vpop.xlane.xlu0 %1281
        %v1283 = vadd.f32 %v634, %v635
        %1284 = vadd.xlane.f32.xlu0 %v1283
        %v1285 = vpop.xlane.xlu0 %1284
        %v1286 = vadd.f32 %v636, %v637
        %1287 = vadd.xlane.f32.xlu0 %v1286
        %v1288 = vpop.xlane.xlu0 %1287
        %v1289 = vadd.f32 %v638, %v639
        %1290 = vadd.xlane.f32.xlu0 %v1289
        %v1291 = vpop.xlane.xlu0 %1290
        %v1292 = vadd.f32 %v640, %v641
        %1293 = vadd.xlane.f32.xlu0 %v1292
        %v1294 = vpop.xlane.xlu0 %1293
        %v1295 = vadd.f32 %v642, %v643
        %1296 = vadd.xlane.f32.xlu0 %v1295
        %v1297 = vpop.xlane.xlu0 %1296
        %v1298 = vadd.f32 %v644, %v645
        %1299 = vadd.xlane.f32.xlu0 %v1298
        %v1300 = vpop.xlane.xlu0 %1299
        %v1301 = vadd.f32 %v646, %v647
        %1302 = vadd.xlane.f32.xlu0 %v1301
        %v1303 = vpop.xlane.xlu0 %1302
        %v1304 = vadd.f32 %v648, %v649
        %1305 = vadd.xlane.f32.xlu0 %v1304
        %v1306 = vpop.xlane.xlu0 %1305
        %v1307 = vadd.f32 %v328, %v329
        %1308 = vadd.xlane.f32.xlu0 %v1307
        %v1309 = vpop.xlane.xlu0 %1308
        %v1310 = vadd.f32 %v330, %v331
        %1311 = vadd.xlane.f32.xlu0 %v1310
        %v1312 = vpop.xlane.xlu0 %1311
        %v1313 = vadd.f32 %v332, %v333
        %1314 = vadd.xlane.f32.xlu0 %v1313
        %v1315 = vpop.xlane.xlu0 %1314
        %v1316 = vadd.f32 %v334, %v335
        %1317 = vadd.xlane.f32.xlu0 %v1316
        %v1318 = vpop.xlane.xlu0 %1317
        %v1319 = vadd.f32 %v336, %v337
        %1320 = vadd.xlane.f32.xlu0 %v1319
        %v1321 = vpop.xlane.xlu0 %1320
        %v1322 = vadd.f32 %v338, %v339
        %1323 = vadd.xlane.f32.xlu0 %v1322
        %v1324 = vpop.xlane.xlu0 %1323
        %v1325 = vadd.f32 %v340, %v341
        %1326 = vadd.xlane.f32.xlu0 %v1325
        %v1327 = vpop.xlane.xlu0 %1326
        %v1328 = vadd.f32 %v342, %v343
        %1329 = vadd.xlane.f32.xlu0 %v1328
        %v1330 = vpop.xlane.xlu0 %1329
        %v1331 = vadd.f32 %v344, %v345
        %1332 = vadd.xlane.f32.xlu0 %v1331
        %v1333 = vpop.xlane.xlu0 %1332
        %v1334 = vadd.f32 %v346, %v347
        %1335 = vadd.xlane.f32.xlu0 %v1334
        %v1336 = vpop.xlane.xlu0 %1335
        %v1337 = vadd.f32 %v348, %v349
        %1338 = vadd.xlane.f32.xlu0 %v1337
        %v1339 = vpop.xlane.xlu0 %1338
        %v1340 = vadd.f32 %v350, %v351
        %1341 = vadd.xlane.f32.xlu0 %v1340
        %v1342 = vpop.xlane.xlu0 %1341
        %v1343 = vadd.f32 %v352, %v353
        %1344 = vadd.xlane.f32.xlu0 %v1343
        %v1345 = vpop.xlane.xlu0 %1344
        %v1346 = vadd.f32 %v354, %v355
        %1347 = vadd.xlane.f32.xlu0 %v1346
        %v1348 = vpop.xlane.xlu0 %1347
        %v1349 = vadd.f32 %v356, %v357
        %1350 = vadd.xlane.f32.xlu0 %v1349
        %v1351 = vpop.xlane.xlu0 %1350
        %v1352 = vadd.f32 %v358, %v359
        %1353 = vadd.xlane.f32.xlu0 %v1352
        %v1354 = vpop.xlane.xlu0 %1353
        %v1355 = vadd.f32 %v540, %v542
        %1356 = vadd.xlane.f32.xlu0 %v1355
        %v1357 = vpop.xlane.xlu0 %1356
        %v1358 = vadd.f32 %v544, %v546
        %1359 = vadd.xlane.f32.xlu0 %v1358
        %v1360 = vpop.xlane.xlu0 %1359
        %v1361 = vadd.f32 %v550, %v552
        %1362 = vadd.xlane.f32.xlu0 %v1361
        %v1363 = vpop.xlane.xlu0 %1362
        %v1364 = vadd.f32 %v554, %v556
        %1365 = vadd.xlane.f32.xlu0 %v1364
        %v1366 = vpop.xlane.xlu0 %1365
        %v1367 = vadd.f32 %v560, %v562
        %1368 = vadd.xlane.f32.xlu0 %v1367
        %v1369 = vpop.xlane.xlu0 %1368
        %v1370 = vadd.f32 %v564, %v566
        %1371 = vadd.xlane.f32.xlu0 %v1370
        %v1372 = vpop.xlane.xlu0 %1371
        %v1373 = vadd.f32 %v570, %v572
        %1374 = vadd.xlane.f32.xlu0 %v1373
        %v1375 = vpop.xlane.xlu0 %1374
        %v1376 = vadd.f32 %v574, %v576
        %1377 = vadd.xlane.f32.xlu0 %v1376
        %v1378 = vpop.xlane.xlu0 %1377
        %v1379 = vadd.f32 %v580, %v582
        %1380 = vadd.xlane.f32.xlu0 %v1379
        %v1381 = vpop.xlane.xlu0 %1380
        %v1382 = vadd.f32 %v584, %v586
        %1383 = vadd.xlane.f32.xlu0 %v1382
        %v1384 = vpop.xlane.xlu0 %1383
        %v1385 = vadd.f32 %v590, %v592
        %1386 = vadd.xlane.f32.xlu0 %v1385
        %v1387 = vpop.xlane.xlu0 %1386
        %v1388 = vadd.f32 %v594, %v596
        %1389 = vadd.xlane.f32.xlu0 %v1388
        %v1390 = vpop.xlane.xlu0 %1389
        %v1391 = vadd.f32 %v600, %v602
        %1392 = vadd.xlane.f32.xlu0 %v1391
        %v1393 = vpop.xlane.xlu0 %1392
        %v1394 = vadd.f32 %v604, %v606
        %1395 = vadd.xlane.f32.xlu0 %v1394
        %v1396 = vpop.xlane.xlu0 %1395
        %v1397 = vadd.f32 %v610, %v612
        %1398 = vadd.xlane.f32.xlu0 %v1397
        %v1399 = vpop.xlane.xlu0 %1398
        %v1400 = vadd.f32 %v614, %v616
        %1401 = vadd.xlane.f32.xlu0 %v1400
        %v1402 = vpop.xlane.xlu0 %1401
        %v1403 = vsub.f32 1.0, %v328
        %v1404 = vsub.f32 1.0, %v329
        %v1405 = vsub.f32 1.0, %v330
        %v1406 = vsub.f32 1.0, %v331
        %v1407 = vsub.f32 1.0, %v332
        %v1408 = vsub.f32 1.0, %v333
        %v1409 = vsub.f32 1.0, %v334
        %v1410 = vsub.f32 1.0, %v335
        %v1411 = vsub.f32 1.0, %v336
        %v1412 = vsub.f32 1.0, %v337
        %v1413 = vsub.f32 1.0, %v338
        %v1414 = vsub.f32 1.0, %v339
        %v1415 = vsub.f32 1.0, %v340
        %v1416 = vsub.f32 1.0, %v341
        %v1417 = vsub.f32 1.0, %v342
        %v1418 = vsub.f32 1.0, %v343
        %v1419 = vsub.f32 1.0, %v344
        %v1420 = vsub.f32 1.0, %v345
        %v1421 = vsub.f32 1.0, %v346
        %v1422 = vsub.f32 1.0, %v347
        %v1423 = vsub.f32 1.0, %v348
        %v1424 = vsub.f32 1.0, %v349
        %v1425 = vsub.f32 1.0, %v350
        %v1426 = vsub.f32 1.0, %v351
        %v1427 = vsub.f32 1.0, %v352
        %v1428 = vsub.f32 1.0, %v353
        %v1429 = vsub.f32 1.0, %v354
        %v1430 = vsub.f32 1.0, %v355
        %v1431 = vsub.f32 1.0, %v356
        %v1432 = vsub.f32 1.0, %v357
        %v1433 = vsub.f32 1.0, %v358
        %v1434 = vsub.f32 1.0, %v359
        %v1435 = vmul.f32 %v1403, %v650
        %v1436 = vmul.f32 %v1404, %v651
        %v1437 = vmul.f32 %v1405, %v652
        %v1438 = vmul.f32 %v1406, %v653
        %v1439 = vmul.f32 %v1407, %v654
        %v1440 = vmul.f32 %v1408, %v655
        %v1441 = vmul.f32 %v1409, %v656
        %v1442 = vmul.f32 %v1410, %v657
        %v1443 = vmul.f32 %v1411, %v658
        %v1444 = vmul.f32 %v1412, %v659
        %v1445 = vmul.f32 %v1413, %v660
        %v1446 = vmul.f32 %v1414, %v661
        %v1447 = vmul.f32 %v1415, %v662
        %v1448 = vmul.f32 %v1416, %v663
        %v1449 = vmul.f32 %v1417, %v664
        %v1450 = vmul.f32 %v1418, %v665
        %v1451 = vmul.f32 %v1419, %v666
        %v1452 = vmul.f32 %v1420, %v667
        %v1453 = vmul.f32 %v1421, %v668
        %v1454 = vmul.f32 %v1422, %v669
        %v1455 = vmul.f32 %v1423, %v670
        %v1456 = vmul.f32 %v1424, %v671
        %v1457 = vmul.f32 %v1425, %v672
        %v1458 = vmul.f32 %v1426, %v673
        %v1459 = vmul.f32 %v1427, %v674
        %v1460 = vmul.f32 %v1428, %v675
        %v1461 = vmul.f32 %v1429, %v676
        %v1462 = vmul.f32 %v1430, %v677
        %v1463 = vmul.f32 %v1431, %v678
        %v1464 = vmul.f32 %v1432, %v679
        %v1465 = vmul.f32 %v1433, %v680
        %v1466 = vmul.f32 %v1434, %v681
        %v1467 = vadd.f32 %v1435, %v1436
        %1468 = vadd.xlane.f32.xlu0 %v1467
        %v1469 = vpop.xlane.xlu0 %1468
        %v1470 = vadd.f32 %v1437, %v1438
        %1471 = vadd.xlane.f32.xlu0 %v1470
        %v1472 = vpop.xlane.xlu0 %1471
        %v1473 = vadd.f32 %v1439, %v1440
        %1474 = vadd.xlane.f32.xlu0 %v1473
        %v1475 = vpop.xlane.xlu0 %1474
        %v1476 = vadd.f32 %v1441, %v1442
        %1477 = vadd.xlane.f32.xlu0 %v1476
        %v1478 = vpop.xlane.xlu0 %1477
        %v1479 = vadd.f32 %v1443, %v1444
        %1480 = vadd.xlane.f32.xlu0 %v1479
        %v1481 = vpop.xlane.xlu0 %1480
        %v1482 = vadd.f32 %v1445, %v1446
        %1483 = vadd.xlane.f32.xlu0 %v1482
        %v1484 = vpop.xlane.xlu0 %1483
        %v1485 = vadd.f32 %v1447, %v1448
        %1486 = vadd.xlane.f32.xlu0 %v1485
        %v1487 = vpop.xlane.xlu0 %1486
        %v1488 = vadd.f32 %v1449, %v1450
        %1489 = vadd.xlane.f32.xlu0 %v1488
        %v1490 = vpop.xlane.xlu0 %1489
        %v1491 = vadd.f32 %v1451, %v1452
        %1492 = vadd.xlane.f32.xlu0 %v1491
        %v1493 = vpop.xlane.xlu0 %1492
        %v1494 = vadd.f32 %v1453, %v1454
        %1495 = vadd.xlane.f32.xlu0 %v1494
        %v1496 = vpop.xlane.xlu0 %1495
        %v1497 = vadd.f32 %v1455, %v1456
        %1498 = vadd.xlane.f32.xlu0 %v1497
        %v1499 = vpop.xlane.xlu0 %1498
        %v1500 = vadd.f32 %v1457, %v1458
        %1501 = vadd.xlane.f32.xlu0 %v1500
        %v1502 = vpop.xlane.xlu0 %1501
        %v1503 = vadd.f32 %v1459, %v1460
        %1504 = vadd.xlane.f32.xlu0 %v1503
        %v1505 = vpop.xlane.xlu0 %1504
        %v1506 = vadd.f32 %v1461, %v1462
        %1507 = vadd.xlane.f32.xlu0 %v1506
        %v1508 = vpop.xlane.xlu0 %1507
        %v1509 = vadd.f32 %v1463, %v1464
        %1510 = vadd.xlane.f32.xlu0 %v1509
        %v1511 = vpop.xlane.xlu0 %1510
        %v1512 = vadd.f32 %v1465, %v1466
        %1513 = vadd.xlane.f32.xlu0 %v1512
        %v1514 = vpop.xlane.xlu0 %1513
        %v1515 = vadd.f32 %v650, %v651
        %1516 = vadd.xlane.f32.xlu0 %v1515
        %v1517 = vpop.xlane.xlu0 %1516
        %v1518 = vadd.f32 %v652, %v653
        %1519 = vadd.xlane.f32.xlu0 %v1518
        %v1520 = vpop.xlane.xlu0 %1519
        %v1521 = vadd.f32 %v654, %v655
        %1522 = vadd.xlane.f32.xlu0 %v1521
        %v1523 = vpop.xlane.xlu0 %1522
        %v1524 = vadd.f32 %v656, %v657
        %1525 = vadd.xlane.f32.xlu0 %v1524
        %v1526 = vpop.xlane.xlu0 %1525
        %v1527 = vadd.f32 %v658, %v659
        %1528 = vadd.xlane.f32.xlu0 %v1527
        %v1529 = vpop.xlane.xlu0 %1528
        %v1530 = vadd.f32 %v660, %v661
        %1531 = vadd.xlane.f32.xlu0 %v1530
        %v1532 = vpop.xlane.xlu0 %1531
        %v1533 = vadd.f32 %v662, %v663
        %1534 = vadd.xlane.f32.xlu0 %v1533
        %v1535 = vpop.xlane.xlu0 %1534
        %v1536 = vadd.f32 %v664, %v665
        %1537 = vadd.xlane.f32.xlu0 %v1536
        %v1538 = vpop.xlane.xlu0 %1537
        %v1539 = vadd.f32 %v666, %v667
        %1540 = vadd.xlane.f32.xlu0 %v1539
        %v1541 = vpop.xlane.xlu0 %1540
        %v1542 = vadd.f32 %v668, %v669
        %1543 = vadd.xlane.f32.xlu0 %v1542
        %v1544 = vpop.xlane.xlu0 %1543
        %v1545 = vadd.f32 %v670, %v671
        %1546 = vadd.xlane.f32.xlu0 %v1545
        %v1547 = vpop.xlane.xlu0 %1546
        %v1548 = vadd.f32 %v672, %v673
        %1549 = vadd.xlane.f32.xlu0 %v1548
        %v1550 = vpop.xlane.xlu0 %1549
        %v1551 = vadd.f32 %v674, %v675
        %1552 = vadd.xlane.f32.xlu0 %v1551
        %v1553 = vpop.xlane.xlu0 %1552
        %v1554 = vadd.f32 %v676, %v677
        %1555 = vadd.xlane.f32.xlu0 %v1554
        %v1556 = vpop.xlane.xlu0 %1555
        %v1557 = vadd.f32 %v678, %v679
        %1558 = vadd.xlane.f32.xlu0 %v1557
        %v1559 = vpop.xlane.xlu0 %1558
        %v1560 = vadd.f32 %v680, %v681
        %1561 = vadd.xlane.f32.xlu0 %v1560
        %v1562 = vpop.xlane.xlu0 %1561
        %v1563 = vadd.f32 %v1261, 1e-08
        %v1564 = vadd.f32 %v1264, 1e-08
        %v1565 = vadd.f32 %v1267, 1e-08
        %v1566 = vadd.f32 %v1270, 1e-08
        %v1567 = vadd.f32 %v1273, 1e-08
        %v1568 = vadd.f32 %v1276, 1e-08
        %v1569 = vadd.f32 %v1279, 1e-08
        %v1570 = vadd.f32 %v1282, 1e-08
        %v1571 = vadd.f32 %v1285, 1e-08
        %v1572 = vadd.f32 %v1288, 1e-08
        %v1573 = vadd.f32 %v1291, 1e-08
        %v1574 = vadd.f32 %v1294, 1e-08
        %v1575 = vadd.f32 %v1297, 1e-08
        %v1576 = vadd.f32 %v1300, 1e-08
        %v1577 = vadd.f32 %v1303, 1e-08
        %v1578 = vadd.f32 %v1306, 1e-08
        %v1579 = vlog2.pop %v1563
        %v1580 = vmul.f32 %v1579, 0.6931472
        %v1581 = vlog2.pop %v1564
        %v1582 = vmul.f32 %v1581, 0.6931472
        %v1583 = vlog2.pop %v1565
        %v1584 = vmul.f32 %v1583, 0.6931472
        %v1585 = vlog2.pop %v1566
        %v1586 = vmul.f32 %v1585, 0.6931472
        %v1587 = vlog2.pop %v1567
        %v1588 = vmul.f32 %v1587, 0.6931472
        %v1589 = vlog2.pop %v1568
        %v1590 = vmul.f32 %v1589, 0.6931472
        %v1591 = vlog2.pop %v1569
        %v1592 = vmul.f32 %v1591, 0.6931472
        %v1593 = vlog2.pop %v1570
        %v1594 = vmul.f32 %v1593, 0.6931472
        %v1595 = vlog2.pop %v1571
        %v1596 = vmul.f32 %v1595, 0.6931472
        %v1597 = vlog2.pop %v1572
        %v1598 = vmul.f32 %v1597, 0.6931472
        %v1599 = vlog2.pop %v1573
        %v1600 = vmul.f32 %v1599, 0.6931472
        %v1601 = vlog2.pop %v1574
        %v1602 = vmul.f32 %v1601, 0.6931472
        %v1603 = vlog2.pop %v1575
        %v1604 = vmul.f32 %v1603, 0.6931472
        %v1605 = vlog2.pop %v1576
        %v1606 = vmul.f32 %v1605, 0.6931472
        %v1607 = vlog2.pop %v1577
        %v1608 = vmul.f32 %v1607, 0.6931472
        %v1609 = vlog2.pop %v1578
        %v1610 = vmul.f32 %v1609, 0.6931472
        %v1611 = vmul.f32 %v1580, 2.0
        %v1612 = vmul.f32 %v1582, 2.0
        %v1613 = vmul.f32 %v1584, 2.0
        %v1614 = vmul.f32 %v1586, 2.0
        %v1615 = vmul.f32 %v1588, 2.0
        %v1616 = vmul.f32 %v1590, 2.0
        %v1617 = vmul.f32 %v1592, 2.0
        %v1618 = vmul.f32 %v1594, 2.0
        %v1619 = vmul.f32 %v1596, 2.0
        %v1620 = vmul.f32 %v1598, 2.0
        %v1621 = vmul.f32 %v1600, 2.0
        %v1622 = vmul.f32 %v1602, 2.0
        %v1623 = vmul.f32 %v1604, 2.0
        %v1624 = vmul.f32 %v1606, 2.0
        %v1625 = vmul.f32 %v1608, 2.0
        %v1626 = vmul.f32 %v1610, 2.0
        %v1627 = vadd.f32 %v1309, 1e-08
        %v1628 = vadd.f32 %v1312, 1e-08
        %v1629 = vadd.f32 %v1315, 1e-08
        %v1630 = vadd.f32 %v1318, 1e-08
        %v1631 = vadd.f32 %v1321, 1e-08
        %v1632 = vadd.f32 %v1324, 1e-08
        %v1633 = vadd.f32 %v1327, 1e-08
        %v1634 = vadd.f32 %v1330, 1e-08
        %v1635 = vadd.f32 %v1333, 1e-08
        %v1636 = vadd.f32 %v1336, 1e-08
        %v1637 = vadd.f32 %v1339, 1e-08
        %v1638 = vadd.f32 %v1342, 1e-08
        %v1639 = vadd.f32 %v1345, 1e-08
        %v1640 = vadd.f32 %v1348, 1e-08
        %v1641 = vadd.f32 %v1351, 1e-08
        %v1642 = vadd.f32 %v1354, 1e-08
        %v1643 = vlog2.pop %v1627
        %v1644 = vmul.f32 %v1643, 0.6931472
        %v1645 = vlog2.pop %v1628
        %v1646 = vmul.f32 %v1645, 0.6931472
        %v1647 = vlog2.pop %v1629
        %v1648 = vmul.f32 %v1647, 0.6931472
        %v1649 = vlog2.pop %v1630
        %v1650 = vmul.f32 %v1649, 0.6931472
        %v1651 = vlog2.pop %v1631
        %v1652 = vmul.f32 %v1651, 0.6931472
        %v1653 = vlog2.pop %v1632
        %v1654 = vmul.f32 %v1653, 0.6931472
        %v1655 = vlog2.pop %v1633
        %v1656 = vmul.f32 %v1655, 0.6931472
        %v1657 = vlog2.pop %v1634
        %v1658 = vmul.f32 %v1657, 0.6931472
        %v1659 = vlog2.pop %v1635
        %v1660 = vmul.f32 %v1659, 0.6931472
        %v1661 = vlog2.pop %v1636
        %v1662 = vmul.f32 %v1661, 0.6931472
        %v1663 = vlog2.pop %v1637
        %v1664 = vmul.f32 %v1663, 0.6931472
        %v1665 = vlog2.pop %v1638
        %v1666 = vmul.f32 %v1665, 0.6931472
        %v1667 = vlog2.pop %v1639
        %v1668 = vmul.f32 %v1667, 0.6931472
        %v1669 = vlog2.pop %v1640
        %v1670 = vmul.f32 %v1669, 0.6931472
        %v1671 = vlog2.pop %v1641
        %v1672 = vmul.f32 %v1671, 0.6931472
        %v1673 = vlog2.pop %v1642
        %v1674 = vmul.f32 %v1673, 0.6931472
        %v1675 = vsub.f32 %v1611, %v1644
        %v1676 = vsub.f32 %v1612, %v1646
        %v1677 = vsub.f32 %v1613, %v1648
        %v1678 = vsub.f32 %v1614, %v1650
        %v1679 = vsub.f32 %v1615, %v1652
        %v1680 = vsub.f32 %v1616, %v1654
        %v1681 = vsub.f32 %v1617, %v1656
        %v1682 = vsub.f32 %v1618, %v1658
        %v1683 = vsub.f32 %v1619, %v1660
        %v1684 = vsub.f32 %v1620, %v1662
        %v1685 = vsub.f32 %v1621, %v1664
        %v1686 = vsub.f32 %v1622, %v1666
        %v1687 = vsub.f32 %v1623, %v1668
        %v1688 = vsub.f32 %v1624, %v1670
        %v1689 = vsub.f32 %v1625, %v1672
        %v1690 = vsub.f32 %v1626, %v1674
        %v1691 = vadd.f32 %v1357, 1e-08
        %v1692 = vadd.f32 %v1360, 1e-08
        %v1693 = vadd.f32 %v1363, 1e-08
        %v1694 = vadd.f32 %v1366, 1e-08
        %v1695 = vadd.f32 %v1369, 1e-08
        %v1696 = vadd.f32 %v1372, 1e-08
        %v1697 = vadd.f32 %v1375, 1e-08
        %v1698 = vadd.f32 %v1378, 1e-08
        %v1699 = vadd.f32 %v1381, 1e-08
        %v1700 = vadd.f32 %v1384, 1e-08
        %v1701 = vadd.f32 %v1387, 1e-08
        %v1702 = vadd.f32 %v1390, 1e-08
        %v1703 = vadd.f32 %v1393, 1e-08
        %v1704 = vadd.f32 %v1396, 1e-08
        %v1705 = vadd.f32 %v1399, 1e-08
        %v1706 = vadd.f32 %v1402, 1e-08
        %v1707 = vlog2.pop %v1691
        %v1708 = vmul.f32 %v1707, 0.6931472
        %v1709 = vlog2.pop %v1692
        %v1710 = vmul.f32 %v1709, 0.6931472
        %v1711 = vlog2.pop %v1693
        %v1712 = vmul.f32 %v1711, 0.6931472
        %v1713 = vlog2.pop %v1694
        %v1714 = vmul.f32 %v1713, 0.6931472
        %v1715 = vlog2.pop %v1695
        %v1716 = vmul.f32 %v1715, 0.6931472
        %v1717 = vlog2.pop %v1696
        %v1718 = vmul.f32 %v1717, 0.6931472
        %v1719 = vlog2.pop %v1697
        %v1720 = vmul.f32 %v1719, 0.6931472
        %v1721 = vlog2.pop %v1698
        %v1722 = vmul.f32 %v1721, 0.6931472
        %v1723 = vlog2.pop %v1699
        %v1724 = vmul.f32 %v1723, 0.6931472
        %v1725 = vlog2.pop %v1700
        %v1726 = vmul.f32 %v1725, 0.6931472
        %v1727 = vlog2.pop %v1701
        %v1728 = vmul.f32 %v1727, 0.6931472
        %v1729 = vlog2.pop %v1702
        %v1730 = vmul.f32 %v1729, 0.6931472
        %v1731 = vlog2.pop %v1703
        %v1732 = vmul.f32 %v1731, 0.6931472
        %v1733 = vlog2.pop %v1704
        %v1734 = vmul.f32 %v1733, 0.6931472
        %v1735 = vlog2.pop %v1705
        %v1736 = vmul.f32 %v1735, 0.6931472
        %v1737 = vlog2.pop %v1706
        %v1738 = vmul.f32 %v1737, 0.6931472
        %v1739 = vsub.f32 %v1675, %v1708
        %v1740 = vsub.f32 %v1676, %v1710
        %v1741 = vsub.f32 %v1677, %v1712
        %v1742 = vsub.f32 %v1678, %v1714
        %v1743 = vsub.f32 %v1679, %v1716
        %v1744 = vsub.f32 %v1680, %v1718
        %v1745 = vsub.f32 %v1681, %v1720
        %v1746 = vsub.f32 %v1682, %v1722
        %v1747 = vsub.f32 %v1683, %v1724
        %v1748 = vsub.f32 %v1684, %v1726
        %v1749 = vsub.f32 %v1685, %v1728
        %v1750 = vsub.f32 %v1686, %v1730
        %v1751 = vsub.f32 %v1687, %v1732
        %v1752 = vsub.f32 %v1688, %v1734
        %v1753 = vsub.f32 %v1689, %v1736
        %v1754 = vsub.f32 %v1690, %v1738
        %v1755 = vadd.f32 %v1469, 1e-08
        %v1756 = vadd.f32 %v1472, 1e-08
        %v1757 = vadd.f32 %v1475, 1e-08
        %v1758 = vadd.f32 %v1478, 1e-08
        %v1759 = vadd.f32 %v1481, 1e-08
        %v1760 = vadd.f32 %v1484, 1e-08
        %v1761 = vadd.f32 %v1487, 1e-08
        %v1762 = vadd.f32 %v1490, 1e-08
        %v1763 = vadd.f32 %v1493, 1e-08
        %v1764 = vadd.f32 %v1496, 1e-08
        %v1765 = vadd.f32 %v1499, 1e-08
        %v1766 = vadd.f32 %v1502, 1e-08
        %v1767 = vadd.f32 %v1505, 1e-08
        %v1768 = vadd.f32 %v1508, 1e-08
        %v1769 = vadd.f32 %v1511, 1e-08
        %v1770 = vadd.f32 %v1514, 1e-08
        %v1771 = vlog2.pop %v1755
        %v1772 = vmul.f32 %v1771, 0.6931472
        %v1773 = vlog2.pop %v1756
        %v1774 = vmul.f32 %v1773, 0.6931472
        %v1775 = vlog2.pop %v1757
        %v1776 = vmul.f32 %v1775, 0.6931472
        %v1777 = vlog2.pop %v1758
        %v1778 = vmul.f32 %v1777, 0.6931472
        %v1779 = vlog2.pop %v1759
        %v1780 = vmul.f32 %v1779, 0.6931472
        %v1781 = vlog2.pop %v1760
        %v1782 = vmul.f32 %v1781, 0.6931472
        %v1783 = vlog2.pop %v1761
        %v1784 = vmul.f32 %v1783, 0.6931472
        %v1785 = vlog2.pop %v1762
        %v1786 = vmul.f32 %v1785, 0.6931472
        %v1787 = vlog2.pop %v1763
        %v1788 = vmul.f32 %v1787, 0.6931472
        %v1789 = vlog2.pop %v1764
        %v1790 = vmul.f32 %v1789, 0.6931472
        %v1791 = vlog2.pop %v1765
        %v1792 = vmul.f32 %v1791, 0.6931472
        %v1793 = vlog2.pop %v1766
        %v1794 = vmul.f32 %v1793, 0.6931472
        %v1795 = vlog2.pop %v1767
        %v1796 = vmul.f32 %v1795, 0.6931472
        %v1797 = vlog2.pop %v1768
        %v1798 = vmul.f32 %v1797, 0.6931472
        %v1799 = vlog2.pop %v1769
        %v1800 = vmul.f32 %v1799, 0.6931472
        %v1801 = vlog2.pop %v1770
        %v1802 = vmul.f32 %v1801, 0.6931472
        %v1803 = vadd.f32 %v1739, %v1772
        %v1804 = vadd.f32 %v1740, %v1774
        %v1805 = vadd.f32 %v1741, %v1776
        %v1806 = vadd.f32 %v1742, %v1778
        %v1807 = vadd.f32 %v1743, %v1780
        %v1808 = vadd.f32 %v1744, %v1782
        %v1809 = vadd.f32 %v1745, %v1784
        %v1810 = vadd.f32 %v1746, %v1786
        %v1811 = vadd.f32 %v1747, %v1788
        %v1812 = vadd.f32 %v1748, %v1790
        %v1813 = vadd.f32 %v1749, %v1792
        %v1814 = vadd.f32 %v1750, %v1794
        %v1815 = vadd.f32 %v1751, %v1796
        %v1816 = vadd.f32 %v1752, %v1798
        %v1817 = vadd.f32 %v1753, %v1800
        %v1818 = vadd.f32 %v1754, %v1802
        %v1819 = vadd.f32 %v1517, 1e-08
        %v1820 = vadd.f32 %v1520, 1e-08
        %v1821 = vadd.f32 %v1523, 1e-08
        %v1822 = vadd.f32 %v1526, 1e-08
        %v1823 = vadd.f32 %v1529, 1e-08
        %v1824 = vadd.f32 %v1532, 1e-08
        %v1825 = vadd.f32 %v1535, 1e-08
        %v1826 = vadd.f32 %v1538, 1e-08
        %v1827 = vadd.f32 %v1541, 1e-08
        %v1828 = vadd.f32 %v1544, 1e-08
        %v1829 = vadd.f32 %v1547, 1e-08
        %v1830 = vadd.f32 %v1550, 1e-08
        %v1831 = vadd.f32 %v1553, 1e-08
        %v1832 = vadd.f32 %v1556, 1e-08
        %v1833 = vadd.f32 %v1559, 1e-08
        %v1834 = vadd.f32 %v1562, 1e-08
        %v1835 = vlog2.pop %v1819
        %v1836 = vmul.f32 %v1835, 0.6931472
        %v1837 = vlog2.pop %v1820
        %v1838 = vmul.f32 %v1837, 0.6931472
        %v1839 = vlog2.pop %v1821
        %v1840 = vmul.f32 %v1839, 0.6931472
        %v1841 = vlog2.pop %v1822
        %v1842 = vmul.f32 %v1841, 0.6931472
        %v1843 = vlog2.pop %v1823
        %v1844 = vmul.f32 %v1843, 0.6931472
        %v1845 = vlog2.pop %v1824
        %v1846 = vmul.f32 %v1845, 0.6931472
        %v1847 = vlog2.pop %v1825
        %v1848 = vmul.f32 %v1847, 0.6931472
        %v1849 = vlog2.pop %v1826
        %v1850 = vmul.f32 %v1849, 0.6931472
        %v1851 = vlog2.pop %v1827
        %v1852 = vmul.f32 %v1851, 0.6931472
        %v1853 = vlog2.pop %v1828
        %v1854 = vmul.f32 %v1853, 0.6931472
        %v1855 = vlog2.pop %v1829
        %v1856 = vmul.f32 %v1855, 0.6931472
        %v1857 = vlog2.pop %v1830
        %v1858 = vmul.f32 %v1857, 0.6931472
        %v1859 = vlog2.pop %v1831
        %v1860 = vmul.f32 %v1859, 0.6931472
        %v1861 = vlog2.pop %v1832
        %v1862 = vmul.f32 %v1861, 0.6931472
        %v1863 = vlog2.pop %v1833
        %v1864 = vmul.f32 %v1863, 0.6931472
        %v1865 = vlog2.pop %v1834
        %v1866 = vmul.f32 %v1865, 0.6931472
        %v1867 = vsub.f32 %v1803, %v1836
        %v1868 = vsub.f32 %v1804, %v1838
        %v1869 = vsub.f32 %v1805, %v1840
        %v1870 = vsub.f32 %v1806, %v1842
        %v1871 = vsub.f32 %v1807, %v1844
        %v1872 = vsub.f32 %v1808, %v1846
        %v1873 = vsub.f32 %v1809, %v1848
        %v1874 = vsub.f32 %v1810, %v1850
        %v1875 = vsub.f32 %v1811, %v1852
        %v1876 = vsub.f32 %v1812, %v1854
        %v1877 = vsub.f32 %v1813, %v1856
        %v1878 = vsub.f32 %v1814, %v1858
        %v1879 = vsub.f32 %v1815, %v1860
        %v1880 = vsub.f32 %v1816, %v1862
        %v1881 = vsub.f32 %v1817, %v1864
        %v1882 = vsub.f32 %v1818, %v1866
        %1883 = vst.msk [vmem:[%s325] sm:$0xff] %vm1242, %v1867
        %1884 = vst.msk [vmem:[%s325 + $0x8] sm:$0xff] %vm1242, %v1868
        %1885 = vst.msk [vmem:[%s325 + $0x10] sm:$0xff] %vm1242, %v1869
        %1886 = vst.msk [vmem:[%s325 + $0x18] sm:$0xff] %vm1242, %v1870
        %1887 = vst.msk [vmem:[%s325 + $0x20] sm:$0xff] %vm1242, %v1871
        %1888 = vst.msk [vmem:[%s325 + $0x28] sm:$0xff] %vm1242, %v1872
        %1889 = vst.msk [vmem:[%s325 + $0x30] sm:$0xff] %vm1242, %v1873
        %1890 = vst.msk [vmem:[%s325 + $0x38] sm:$0xff] %vm1242, %v1874
        %1891 = vst.msk [vmem:[%s325 + $0x40] sm:$0xff] %vm1242, %v1875
        %1892 = vst.msk [vmem:[%s325 + $0x48] sm:$0xff] %vm1242, %v1876
        %1893 = vst.msk [vmem:[%s325 + $0x50] sm:$0xff] %vm1242, %v1877
        %1894 = vst.msk [vmem:[%s325 + $0x58] sm:$0xff] %vm1242, %v1878
        %1895 = vst.msk [vmem:[%s325 + $0x60] sm:$0xff] %vm1242, %v1879
        %1896 = vst.msk [vmem:[%s325 + $0x68] sm:$0xff] %vm1242, %v1880
        %1897 = vst.msk [vmem:[%s325 + $0x70] sm:$0xff] %vm1242, %v1881
        %1898 = vst.msk [vmem:[%s325 + $0x78] sm:$0xff] %vm1242, %v1882
        %s1899 = smul.u32 16, %s24
        %p1900 = scmp.lt.s32.totalorder %s23, 1
        %s1901 = scalar_select %p1900, %s23, 1
        %p1902 = scmp.lt.s32.totalorder %s1899, 31
        %s1903 = scalar_select %p1902, %s1899, 31
        %s1904 = smul.addr %s1901, 32
        %s1905 = sadd.s32 %s1903, %s1904
        %s1906 = smul.addr %s1905, 8
        %s1907 = scalar_lea.vmem %s3, %s1906
        %s1908 = smul.u32 16, %s24
        %p1909 = scmp.lt.s32.totalorder %s23, 1
        %s1910 = scalar_select %p1909, %s23, 1
        %p1911 = scmp.lt.s32.totalorder %s1908, 31
        %s1912 = scalar_select %p1911, %s1908, 31
        %s1913 = smul.addr %s1910, 32
        %s1914 = sadd.s32 %s1912, %s1913
        %s1915 = smul.addr %s1914, 8
        %s1916 = scalar_lea.vmem %s4, %s1915
        // Predicated region
        $region37: #{get_loss.3} parent=31 // pred_check
          %p1917 = pneg %p133
        $region38: #{get_loss.3} parent=31 // pred_check_branch
          %1919 = sbr.rel (%p1917) target = $region40
        $region39: #{get_loss.3} parent=31 // pred_region
          %s1920 = smul.u32 16, %s24
        $region40: #{get_loss.3} parent=31 // pred_fallthru
          _
        // Predicated region
        $region41: #{get_loss.3} parent=31 // pred_check
          %p1921 = pneg %p161
        $region42: #{get_loss.3} parent=31 // pred_check_branch
          %1923 = sbr.rel (%p1921) target = $region44
        $region43: #{get_loss.3} parent=31 // pred_region
          %s1924 = smul.u32 16, %s24
        $region44: #{get_loss.3} parent=31 // pred_fallthru
          _
      $region32: #{get_loss.3} parent=5 // pred_fallthru
        _
      %p1925 = scmp.le.s32.totalorder 2, %s14
      // Predicated region
      $region45: #{get_loss.3} parent=5 // pred_check
        %p1926 = pneg %p1925
      $region46: #{get_loss.3} parent=5 // pred_check_branch
        %1928 = sbr.rel (%p1926) target = $region48
      $region47: #{get_loss.3} parent=5 // pred_region
        %s1929 = ssub.s32 %s14, 2
        // Predicated region
        $region49: #{get_loss.3} parent=47 // pred_check
          %p1930 = pneg %p139
        $region50: #{get_loss.3} parent=47 // pred_check_branch
          %1932 = sbr.rel (%p1930) target = $region52
        $region51: #{get_loss.3} parent=47 // pred_region
          %s1933 = smul.u32 16, %s26
          %p1934 = scmp.lt.s32.totalorder %s25, 1
          %s1935 = scalar_select %p1934, %s25, 1
          %p1936 = scmp.lt.s32.totalorder %s1933, 31
          %s1937 = scalar_select %p1936, %s1933, 31
          %s1938 = smul.addr %s1935, 32
          %s1939 = sadd.s32 %s1937, %s1938
          %s1940 = smul.addr %s1939, 8
          %s1941 = scalar_lea.vmem %s3, %s1940
        $region52: #{get_loss.3} parent=47 // pred_fallthru
          _
        // Predicated region
        $region53: #{get_loss.3} parent=47 // pred_check
          %p1942 = pneg %p167
        $region54: #{get_loss.3} parent=47 // pred_check_branch
          %1944 = sbr.rel (%p1942) target = $region56
        $region55: #{get_loss.3} parent=47 // pred_region
          %s1945 = smul.u32 16, %s26
          %p1946 = scmp.lt.s32.totalorder %s25, 1
          %s1947 = scalar_select %p1946, %s25, 1
          %p1948 = scmp.lt.s32.totalorder %s1945, 31
          %s1949 = scalar_select %p1948, %s1945, 31
          %s1950 = smul.addr %s1947, 32
          %s1951 = sadd.s32 %s1949, %s1950
          %s1952 = smul.addr %s1951, 8
          %s1953 = scalar_lea.vmem %s4, %s1952
        $region56: #{get_loss.3} parent=47 // pred_fallthru
          _
      $region48: #{get_loss.3} parent=5 // pred_fallthru
        _
    $region6: #{get_loss.3} parent=1 // loop_footer
      %s18 = sadd.s32 1, %s14
    $region7: #{get_loss.3} parent=1 // loop_footer_branch
      %13 = sbr.rel target = $region3
    $region8: #{get_loss.3} parent=1 // loop_exit
      _
    %1954 = vsyncpa [#allocation3], 1
    %s1955 = scalar_lea.sflag [#allocation3], 1
    %1956 = vsyncpa %s1955, 1

</llo_original>
